<compile_context>
chip_gen: v7x
topology: tpu7x:2x2x1
jax: 0.10.0
libtpu: 0.0.40
codegen_flags: <defaults>
</compile_context>

<pallas_src>
import numpy as np
import jax
import jax.numpy as jnp
from jax.experimental import pallas as pl
from jax.experimental.pallas import tpu as pltpu

N_WT = 20
WT_LEN = 512


# ---------------------------------------------------------------------------
# Pallas kernel: wavetable oscillator bank + attention/amplitude mix
# ---------------------------------------------------------------------------
def _wavetable_bank_kernel(index_ref, attn_ref, e_ref, wt_ref, wt_next_ref, out_ref):
    # index_ref   : (1, 1, TILE_T)        f32 phase index in [0, WT_LEN)
    # attn_ref    : (1, 1, N_WT, F_TILE)  f32 frame-rate attention * amplitude
    # e_ref       : (F_TILE, TILE_T)      f32 static 0/1 nearest-upsample matrix (resident)
    # wt_ref      : (N_WT, WT_LEN)        f32 processed wavetables (resident)
    # wt_next_ref : (N_WT, WT_LEN)        f32 wt rolled by -1 (wt[(i+1) % WT_LEN], resident)
    # out_ref     : (1, 1, TILE_T)        f32
    idx = index_ref[0]                                   # (1, TILE_T)
    tile_t = idx.shape[-1]

    lo = jnp.floor(idx)
    alpha = idx - lo                                     # (1, TILE_T) in [0, 1)
    # & (WT_LEN-1) guards the f32-mod edge case where idx rounds to exactly 512.0
    lo_i = lo.astype(jnp.int32) & (WT_LEN - 1)

    # Exact 0/1 one-hot "gather" matrix — the only large VALU work in the kernel
    # (1 compare + 1 int->f32 convert over (WT_LEN, TILE_T)).
    k = jax.lax.broadcasted_iota(jnp.int32, (WT_LEN, tile_t), 0)
    onehot = (k == lo_i).astype(jnp.float32)             # (WT_LEN, TILE_T)

    # Both interpolation endpoints for all 20 oscillators via the MXU (FLOPs are trivial,
    # MXU is ~90% idle anyway — that's fine, we're buying VALU cycles).
    v_lo = jnp.dot(wt_ref[...], onehot, preferred_element_type=jnp.float32)       # (N_WT, T)
    v_hi = jnp.dot(wt_next_ref[...], onehot, preferred_element_type=jnp.float32)  # (N_WT, T)

    # Linear interpolation on the 25x smaller (N_WT, TILE_T) result.
    sigs = v_lo + alpha * (v_hi - v_lo)                  # (N_WT, TILE_T)

    # Frame-rate attention*amp expanded over block_size samples with the static resident
    # 0/1 matrix (no per-step iota/compare work, no upsampled HBM array).
    attn = attn_ref[0, 0]                                # (N_WT, F_TILE)
    attn_up = jnp.dot(attn, e_ref[...], preferred_element_type=jnp.float32)       # (N_WT, T)

    out_ref[0] = jnp.sum(sigs * attn_up, axis=0, keepdims=True)   # (1, TILE_T), lane-dense


def _frames_per_tile(n_frames, block_size, target_tile_t):
    """Largest frame count per tile s.t. tile_t = frames*block_size is a legal lane tile."""
    target_frames = max(1, target_tile_t // block_size)
    if n_frames <= target_frames:
        return n_frames
    for d in range(target_frames, 0, -1):
        if n_frames % d == 0 and (d * block_size) % 128 == 0:
            return d
    # Fallback: single tile spanning all frames (block == full array dim, always legal;
    # may lose lane-dense alignment if T itself is not a multiple of 128).
    return n_frames


def _make_upsample_matrix(f_tile, block_size):
    # E[f, t] = 1 iff sample t belongs to frame f (nearest / hold upsample by block_size).
    f = np.arange(f_tile)[:, None]
    t = np.arange(f_tile * block_size)[None, :]
    return jnp.asarray((t // block_size == f).astype(np.float32))


def wavetable_bank(index_bt, attn_amp_frames, wt_mat, wt_next_mat, block_size,
                   target_tile_t=2048):
    """index_bt: (B, T) f32 phase; attn_amp_frames: (B, F, N_WT) f32 (attention*amplitude
    at frame rate, T = F*block_size); wt_mat / wt_next_mat: (N_WT, WT_LEN) f32
    -> (B, T, 1) f32.

    target_tile_t=2048 is safe on v5e/v6e/v7x with the 32 MiB scoped VMEM limit; on v6e
    (128 MiB physical VMEM) 4096-8192 with a larger limit shaves a bit more per-step
    overhead (modest win — the kernel is VALU-bound).
    """
    B, T = index_bt.shape
    F = attn_amp_frames.shape[1]
    assert T == F * block_size

    f_tile = _frames_per_tile(F, block_size, target_tile_t)
    tile_t = f_tile * block_size
    n_tiles = F // f_tile

    index3 = index_bt.reshape(B, 1, T)
    # (B, F, N_WT) -> (B, n_tiles, N_WT, f_tile): frame-rate data, trivially small.
    attn_tiled = (attn_amp_frames.transpose(0, 2, 1)
                  .reshape(B, N_WT, n_tiles, f_tile)
                  .transpose(0, 2, 1, 3))
    E = _make_upsample_matrix(f_tile, block_size)        # (f_tile, tile_t) static 0/1

    cost = pl.CostEstimate(
        flops=int(2 * B * (2 * N_WT) * WT_LEN * T + 2 * B * N_WT * f_tile * T),
        transcendentals=0,
        bytes_accessed=int(4 * (index3.size + attn_tiled.size + E.size
                                + wt_mat.size + wt_next_mat.size + B * T)),
    )

    out = pl.pallas_call(
        _wavetable_bank_kernel,
        out_shape=jax.ShapeDtypeStruct((B, 1, T), jnp.float32),
        grid_spec=pltpu.PrefetchScalarGridSpec(
            num_scalar_prefetch=0,
            grid=(B, n_tiles),
            in_specs=[
                pl.BlockSpec((1, 1, tile_t), lambda b, t: (b, 0, t)),
                pl.BlockSpec((1, 1, N_WT, f_tile), lambda b, t: (b, t, 0, 0)),
                pl.BlockSpec((f_tile, tile_t), lambda b, t: (0, 0)),      # resident E
                pl.BlockSpec((N_WT, WT_LEN), lambda b, t: (0, 0)),        # resident wt
                pl.BlockSpec((N_WT, WT_LEN), lambda b, t: (0, 0)),        # resident wt_next
            ],
            out_specs=pl.BlockSpec((1, 1, tile_t), lambda b, t: (b, 0, t)),
        ),
        compiler_params=pltpu.CompilerParams(
            dimension_semantics=("parallel", "parallel"),
            vmem_limit_bytes=32 * 1024 * 1024,
        ),
        cost_estimate=cost,
    )(index3, attn_tiled, E, wt_mat, wt_next_mat)
    return out.reshape(B, T, 1)


# ---------------------------------------------------------------------------
# JAX glue matching the PyTorch reference semantics
# ---------------------------------------------------------------------------
def exp_sigmoid(x, exponent=10.0, max_value=2.0, threshold=1e-7):
    return max_value * jax.nn.sigmoid(x) ** jnp.log(jnp.float32(exponent)) + threshold


def upsample_linear(x, factor):
    # (B, F, C) -> (B, F*factor, C); matches torch F.interpolate(mode='linear',
    # align_corners=False)
    B, F, C = x.shape
    out_len = F * factor
    pos = (jnp.arange(out_len, dtype=jnp.float32) + 0.5) / factor - 0.5
    pos = jnp.clip(pos, 0.0, F - 1)
    lo = jnp.floor(pos).astype(jnp.int32)
    hi = jnp.minimum(lo + 1, F - 1)
    w = pos - lo.astype(jnp.float32)
    return x[:, lo, :] * (1.0 - w)[None, :, None] + x[:, hi, :] * w[None, :, None]


def amp_to_impulse_response(amp, target_size):
    # TODO(synk): FFT has no Pallas equivalent; kept in plain JAX (XLA FFT).
    amp_c = amp.astype(jnp.complex64)                    # zero imaginary part
    ir = jnp.fft.irfft(amp_c)                            # (..., 2*(n_bands-1))
    filter_size = ir.shape[-1]
    ir = jnp.roll(ir, filter_size // 2, axis=-1)
    n = jnp.arange(filter_size, dtype=jnp.float32)
    win = 0.5 - 0.5 * jnp.cos(2.0 * jnp.pi * n / filter_size)  # periodic Hann (torch default)
    ir = ir * win
    pad = [(0, 0)] * (ir.ndim - 1) + [(0, int(target_size) - int(filter_size))]
    ir = jnp.pad(ir, pad)
    ir = jnp.roll(ir, (-filter_size) // 2, axis=-1)
    return ir


def fft_convolve(signal, kernel):
    sig_pad = [(0, 0)] * (signal.ndim - 1) + [(0, signal.shape[-1])]
    ker_pad = [(0, 0)] * (kernel.ndim - 1) + [(kernel.shape[-1], 0)]
    signal = jnp.pad(signal, sig_pad)
    kernel = jnp.pad(kernel, ker_pad)
    output = jnp.fft.irfft(jnp.fft.rfft(signal) * jnp.fft.rfft(kernel))
    return output[..., output.shape[-1] // 2:]


# --- Reverb (parameters initialized deterministically) ---
def init_reverb(key, length, sample_rate):
    noise = jax.random.uniform(key, (length, 1), dtype=jnp.float32) * 2.0 - 1.0
    return {
        "noise": noise,
        "decay": jnp.float32(5.0),
        "wet": jnp.float32(0.0),
        "t": (jnp.arange(length, dtype=jnp.float32) / sample_rate).reshape(1, -1, 1),
        "length": length,
    }


def reverb_apply(params, x):
    t = jnp.exp(-jax.nn.softplus(-params["decay"]) * params["t"] * 500.0)
    noise = params["noise"] * t                          # (1, length, 1)
    impulse = noise * jax.nn.sigmoid(params["wet"])
    impulse = impulse.at[:, 0].set(1.0)
    lenx = x.shape[1]
    impulse = jnp.pad(impulse, ((0, 0), (0, lenx - params["length"]), (0, 0)))
    out = fft_convolve(x[..., 0], impulse[..., 0])[..., None]
    return out


# --- Wavetable parameters ---
def generate_wavetable(length, f, cycle=1, phase=0.0):
    i = np.arange(length, dtype=np.float32)
    return f(cycle * 2.0 * np.pi * i / length + 2.0 * phase * np.pi).astype(np.float32)


def init_wavetables(key, n_wavetables=N_WT, wavetable_len=WT_LEN):
    phases = [0.17, 0.42, 0.63, 0.85]  # deterministic stand-ins for random.uniform(0, 1)
    tables = []
    for idx in range(n_wavetables):
        if idx < 4:
            wt = generate_wavetable(wavetable_len, np.sin, cycle=idx + 1, phase=phases[idx])
        else:
            key, sub = jax.random.split(key)
            wt = np.asarray(jax.random.normal(sub, (wavetable_len,)) * 0.01, dtype=np.float32)
        wt = np.concatenate([wt[:-1], wt[:1]])           # wrap last sample to first
        tables.append(wt)
    return jnp.asarray(np.stack(tables, axis=0))         # (N_WT, WT_LEN)


def _process_wavetables(wt_tables):
    # first 4 are fixed sine tables, the rest go through tanh (as in the torch module)
    return jnp.concatenate([wt_tables[:4], jnp.tanh(wt_tables[4:])], axis=0)


def wavetable_synth_forward(wt_tables, f0_up, attn_amp_frames, sr, block_size):
    # f0_up: (B, T, 1) sample-rate pitch; attn_amp_frames: (B, F, N_WT) frame-rate weights
    freq = f0_up[..., 0]                                  # (B, T)
    increment = freq / sr * WT_LEN
    # TODO(synk): plain f32 cumsum matches the torch reference, but phase error grows for
    # very long signals; a chunked/compensated accumulation (or moving the phase scan into
    # the kernel with scalar-prefetched per-tile start phases) would fix that upstream.
    index = jnp.cumsum(increment, axis=-1) - increment[:, :1]
    index = jnp.mod(index, WT_LEN)                        # (B, T) in [0, WT_LEN)
    wt_proc = _process_wavetables(wt_tables).astype(jnp.float32)   # (N_WT, WT_LEN)
    wt_next = jnp.roll(wt_proc, shift=-1, axis=1)         # wt[(i+1) % WT_LEN], host-side
    return wavetable_bank(index.astype(jnp.float32),
                          attn_amp_frames.astype(jnp.float32),
                          wt_proc, wt_next, block_size)


# ---------------------------------------------------------------------------
# WTpNsynth forward
# ---------------------------------------------------------------------------
def wtpn_forward(wt_tables, reverb_params, controls, sample_rate, block_size, noise_key):
    attentions = exp_sigmoid(controls["wave_attention"])             # (B, F, N_WT)
    noise_bands = exp_sigmoid(controls["noise_bands"])
    total_amp = exp_sigmoid(controls["amplitude"])                   # (B, F, 1)
    attentions = attentions / jnp.sum(attentions, axis=-1, keepdims=True)

    # Fold amplitude into the attention weights at frame rate; the nearest upsample by
    # block_size is performed inside the Pallas kernel (no (B, T, N_WT) HBM array).
    attn_amp = attentions * total_amp                                # (B, F, N_WT)

    f0_up = upsample_linear(controls["f0_hz"], block_size)           # (B, T, 1)
    wavetable_signal = wavetable_synth_forward(
        wt_tables, f0_up, attn_amp, sample_rate, block_size)         # (B, T, 1)  [Pallas]

    impulse = amp_to_impulse_response(noise_bands, block_size)       # (B, F, block)
    B, F, _ = impulse.shape
    noise = jax.random.uniform(noise_key, (B, F, block_size), dtype=impulse.dtype) * 2.0 - 1.0
    noise = fft_convolve(noise, impulse)
    noise = noise.reshape(B, -1, 1)                                  # (B, T, 1)

    dereverb_signal = wavetable_signal + noise
    synth_signal = reverb_apply(reverb_params, dereverb_signal)

    return {
        "synth_audio": synth_signal,
        "dereverb_audio": dereverb_signal,
        "noise_audio": noise,
        "wavetable_audio": wavetable_signal,
        "amplitude": controls["amplitude"],
        "wave_attention": controls["wave_attention"],
        "noise_bands": controls["noise_bands"],
        "f0_hz": controls["f0_hz"],
    }


# ---------------------------------------------------------------------------
# Pure-JAX reference for the wavetable bank (torch semantics) — sanity check
# ---------------------------------------------------------------------------
def _wavetable_bank_reference(wt_tables, controls, sr, block_size):
    attn = exp_sigmoid(controls["wave_attention"])
    attn = attn / jnp.sum(attn, axis=-1, keepdims=True)
    amp = exp_sigmoid(controls["amplitude"])
    attn_amp = attn * amp                                           # (B, F, N_WT)
    f0_up = upsample_linear(controls["f0_hz"], block_size)
    freq = f0_up[..., 0]
    inc = freq / sr * WT_LEN
    index = jnp.mod(jnp.cumsum(inc, axis=-1) - inc[:, :1], WT_LEN)  # (B, T)
    wt_proc = _process_wavetables(wt_tables)                        # (N_WT, WT_LEN) f32
    lo = jnp.floor(index)
    alpha = index - lo
    lo_i = lo.astype(jnp.int32)
    hi_i = (lo_i + 1) % WT_LEN
    wlo = wt_proc[:, lo_i]                                          # (N_WT, B, T)
    whi = wt_proc[:, hi_i]
    sig = wlo + alpha[None] * (whi - wlo)
    attn_up = jnp.repeat(attn_amp, block_size, axis=1)              # (B, T, N_WT)
    return jnp.einsum("wbt,btw->bt", sig, attn_up)[..., None]       # (B, T, 1)


if __name__ == "__main__":
    SAMPLE_RATE = 128      # small, synthetic
    BLOCK_SIZE = 64
    B = 2
    N_FRAMES = 8           # -> T = 512 samples (>= reverb length = SAMPLE_RATE)
    N_BANDS = 8

    key = jax.random.PRNGKey(0)
    k_att, k_nb, k_amp, k_f0, k_wt, k_rev, k_noise = jax.random.split(key, 7)

    controls = {
        "wave_attention": jax.random.normal(k_att, (B, N_FRAMES, N_WT), jnp.float32),
        "noise_bands": jax.random.normal(k_nb, (B, N_FRAMES, N_BANDS), jnp.float32),
        "amplitude": jax.random.normal(k_amp, (B, N_FRAMES, 1), jnp.float32),
        "f0_hz": 8.0 + 40.0 * jax.random.uniform(k_f0, (B, N_FRAMES, 1), jnp.float32),
    }

    wt_tables = init_wavetables(k_wt)
    reverb_params = init_reverb(k_rev, length=SAMPLE_RATE, sample_rate=SAMPLE_RATE)

    out = wtpn_forward(wt_tables, reverb_params, controls, SAMPLE_RATE, BLOCK_SIZE, k_noise)
    jax.block_until_ready(out["synth_audio"])

    T = N_FRAMES * BLOCK_SIZE
    assert out["synth_audio"].shape == (B, T, 1)
    assert out["wavetable_audio"].shape == (B, T, 1)

    # Sanity-check the Pallas wavetable bank against the f32 gather reference.
    # Kernel is now f32 end-to-end; generous tolerance only covers possible MXU
    # f32-matmul decomposition rounding.
    ref = _wavetable_bank_reference(wt_tables, controls, SAMPLE_RATE, BLOCK_SIZE)
    err = float(jnp.max(jnp.abs(out["wavetable_audio"] - ref)))
    assert err < 5e-2, f"wavetable bank mismatch vs reference: max abs err = {err}"

    print("KERNEL_OK")
</pallas_src>

<mosaic_0001>
module attributes {stable_mosaic.version = 11 : i64} {
  func.func @_wavetable_bank_kernel(%arg0: i32, %arg1: i32, %arg2: memref<1x1x512xf32, #tpu.memory_space<vmem>>, %arg3: memref<1x1x20x8xf32, #tpu.memory_space<vmem>>, %arg4: memref<8x512xf32, #tpu.memory_space<vmem>>, %arg5: memref<20x512xf32, #tpu.memory_space<vmem>>, %arg6: memref<20x512xf32, #tpu.memory_space<vmem>>, %arg7: memref<1x1x512xf32, #tpu.memory_space<vmem>>) attributes {dimension_semantics = [#tpu.dimension_semantics<parallel>, #tpu.dimension_semantics<parallel>], iteration_bounds = array<i64: 2, 1>, scalar_prefetch = 0 : i64, scratch_operands = 0 : i64, tpu.core_type = #tpu.core_type<tc>, window_params = [{transform_indices = @transform_0, window_bounds = array<i64: 1, 1, 512>}, {transform_indices = @transform_1, window_bounds = array<i64: 1, 1, 20, 8>}, {pipeline_mode = #tpu.pipeline_mode<synchronous>, transform_indices = @transform_2, window_bounds = array<i64: 8, 512>}, {pipeline_mode = #tpu.pipeline_mode<synchronous>, transform_indices = @transform_3, window_bounds = array<i64: 20, 512>}, {pipeline_mode = #tpu.pipeline_mode<synchronous>, transform_indices = @transform_4, window_bounds = array<i64: 20, 512>}, {transform_indices = @transform_5, window_bounds = array<i64: 1, 1, 512>}]} {
    %c0 = arith.constant 0 : index
    %c0_0 = arith.constant 0 : index
    %c0_1 = arith.constant 0 : index
    %0 = vector.load %arg2[%c0, %c0_0, %c0_1] : memref<1x1x512xf32, #tpu.memory_space<vmem>>, vector<1x1x512xf32>
    %1 = vector.shape_cast %0 : vector<1x1x512xf32> to vector<1x512xf32>
    %2 = math.floor %1 : vector<1x512xf32>
    %3 = arith.subf %1, %2 : vector<1x512xf32>
    %4 = arith.fptosi %2 : vector<1x512xf32> to vector<1x512xi32>
    %c511_i32 = arith.constant 511 : i32
    %5 = vector.broadcast %c511_i32 : i32 to vector<1x512xi32>
    %6 = arith.andi %4, %5 : vector<1x512xi32>
    %7 = tpu.iota {dimensions = array<i32: 0>} : vector<512x512xi32>
    %8 = vector.broadcast %6 : vector<1x512xi32> to vector<512x512xi32>
    %9 = arith.cmpi eq, %7, %8 : vector<512x512xi32>
    %10 = arith.extui %9 : vector<512x512xi1> to vector<512x512xi32>
    %11 = arith.sitofp %10 : vector<512x512xi32> to vector<512x512xf32>
    %c0_2 = arith.constant 0 : index
    %c0_3 = arith.constant 0 : index
    %12 = vector.load %arg5[%c0_2, %c0_3] : memref<20x512xf32, #tpu.memory_space<vmem>>, vector<20x512xf32>
    %cst = arith.constant dense<0.000000e+00> : vector<20x512xf32>
    %13 = tpu.matmul %12, %11, %cst {dimension_numbers = #tpu.dot_dimension_numbers<[1], [0], [0], [1], [0, 0, 1, 1], [], []>} : vector<20x512xf32>, vector<512x512xf32>, vector<20x512xf32> -> vector<20x512xf32>
    %c0_4 = arith.constant 0 : index
    %c0_5 = arith.constant 0 : index
    %14 = vector.load %arg6[%c0_4, %c0_5] : memref<20x512xf32, #tpu.memory_space<vmem>>, vector<20x512xf32>
    %cst_6 = arith.constant dense<0.000000e+00> : vector<20x512xf32>
    %15 = tpu.matmul %14, %11, %cst_6 {dimension_numbers = #tpu.dot_dimension_numbers<[1], [0], [0], [1], [0, 0, 1, 1], [], []>} : vector<20x512xf32>, vector<512x512xf32>, vector<20x512xf32> -> vector<20x512xf32>
    %16 = arith.subf %15, %13 : vector<20x512xf32>
    %17 = vector.broadcast %3 : vector<1x512xf32> to vector<20x512xf32>
    %18 = arith.mulf %17, %16 : vector<20x512xf32>
    %19 = arith.addf %13, %18 : vector<20x512xf32>
    %c0_7 = arith.constant 0 : index
    %c0_8 = arith.constant 0 : index
    %c0_9 = arith.constant 0 : index
    %c0_10 = arith.constant 0 : index
    %20 = vector.load %arg3[%c0_7, %c0_8, %c0_9, %c0_10] : memref<1x1x20x8xf32, #tpu.memory_space<vmem>>, vector<1x1x20x8xf32>
    %21 = vector.shape_cast %20 : vector<1x1x20x8xf32> to vector<20x8xf32>
    %c0_11 = arith.constant 0 : index
    %c0_12 = arith.constant 0 : index
    %22 = vector.load %arg4[%c0_11, %c0_12] : memref<8x512xf32, #tpu.memory_space<vmem>>, vector<8x512xf32>
    %cst_13 = arith.constant dense<0.000000e+00> : vector<20x512xf32>
    %23 = tpu.matmul %21, %22, %cst_13 {dimension_numbers = #tpu.dot_dimension_numbers<[1], [0], [0], [1], [0, 0, 1, 1], [], []>} : vector<20x8xf32>, vector<8x512xf32>, vector<20x512xf32> -> vector<20x512xf32>
    %24 = arith.mulf %19, %23 : vector<20x512xf32>
    %cst_14 = arith.constant dense<0.000000e+00> : vector<512xf32>
    %25 = vector.multi_reduction <add>, %24, %cst_14 [0] : vector<20x512xf32> to vector<512xf32>
    %26 = vector.shape_cast %25 : vector<512xf32> to vector<1x512xf32>
    %c0_15 = arith.constant 0 : index
    %c0_16 = arith.constant 0 : index
    %c0_17 = arith.constant 0 : index
    %27 = vector.load %arg7[%c0_15, %c0_16, %c0_17] : memref<1x1x512xf32, #tpu.memory_space<vmem>>, vector<1x1x512xf32>
    %28 = vector.shape_cast %27 : vector<1x1x512xf32> to vector<1x512xf32>
    %29 = vector.shape_cast %26 : vector<1x512xf32> to vector<1x1x512xf32>
    tpu.vector_store %arg7[%c0_15, %c0_16, %c0_17], %29 {strides = array<i32>} : memref<1x1x512xf32, #tpu.memory_space<vmem>>, vector<1x1x512xf32>,
    return
  }
  func.func @transform_0(%arg0: i32, %arg1: i32) -> (i32, i32, i32) {
    %c0_i32 = arith.constant 0 : i32
    %c0_i32_0 = arith.constant 0 : i32
    return %arg0, %c0_i32, %arg1 : i32, i32, i32
  }
  func.func @transform_1(%arg0: i32, %arg1: i32) -> (i32, i32, i32, i32) {
    %c0_i32 = arith.constant 0 : i32
    %c0_i32_0 = arith.constant 0 : i32
    %c0_i32_1 = arith.constant 0 : i32
    return %arg0, %arg1, %c0_i32, %c0_i32_0 : i32, i32, i32, i32
  }
  func.func @transform_2(%arg0: i32, %arg1: i32) -> (i32, i32) {
    %c0_i32 = arith.constant 0 : i32
    %c0_i32_0 = arith.constant 0 : i32
    %c0_i32_1 = arith.constant 0 : i32
    return %c0_i32, %c0_i32_0 : i32, i32
  }
  func.func @transform_3(%arg0: i32, %arg1: i32) -> (i32, i32) {
    %c0_i32 = arith.constant 0 : i32
    %c0_i32_0 = arith.constant 0 : i32
    %c0_i32_1 = arith.constant 0 : i32
    return %c0_i32, %c0_i32_0 : i32, i32
  }
  func.func @transform_4(%arg0: i32, %arg1: i32) -> (i32, i32) {
    %c0_i32 = arith.constant 0 : i32
    %c0_i32_0 = arith.constant 0 : i32
    %c0_i32_1 = arith.constant 0 : i32
    return %c0_i32, %c0_i32_0 : i32, i32
  }
  func.func @transform_5(%arg0: i32, %arg1: i32) -> (i32, i32, i32) {
    %c0_i32 = arith.constant 0 : i32
    %c0_i32_0 = arith.constant 0 : i32
    return %arg0, %c0_i32, %arg1 : i32, i32, i32
  }
}

</mosaic_0001>

<llo_original>
// kernel: tpu_custom_call.1
$region0: #{tpu_custom_call.1}
  #allocation0 [shape = 'u32[]', space=smem, size = 0x4, offset = 0x4, fixed_abs, tag = 'smem constant byte address 0x4 - core index']
  #allocation1 [shape = 'u32[144,128]{1,0:T(1,128)}', space=vmem, size = 0x12000, scoped, tag = 'internal scratch']
  %s0 = inlined_call_operand.vmem [shape: f32[2,1,512], index: 0, kind: input, shape index: {}]
  %s1 = inlined_call_operand.vmem [shape: f32[2,1,20,8], index: 1, kind: input, shape index: {}]
  %s2 = inlined_call_operand.vmem [shape: f32[8,512], index: 2, kind: input, shape index: {}]
  %s3 = inlined_call_operand.hbm [shape: f32[20,512], index: 3, kind: input, shape index: {}]
  %s4 = inlined_call_operand.hbm [shape: f32[20,512], index: 4, kind: input, shape index: {}]
  %s5 = inlined_call_operand.hbm [shape: f32[2,1,512], index: 5, kind: output, shape index: {}]
  %s6 = sld [smem:[#allocation0]]
  $region61: #{tpu_custom_call.1} parent=0
    _
  %s8 = ssub.s32 1, %s6
  %s9 = scalar_select 0, %s8, %s6
  $region1: #{tpu_custom_call.1} parent=0
    #allocation2 [shape = 'u8[49152]{0}', space=vmem, size = 0xc000, scoped, tag = 'input window, operand 3, single buffered']
    #allocation3 [shape = 's32[2]{0}', space=sflag, size = 0x8, scoped, tag = 'scoped memory for tpu_custom_call.1']
    #allocation4 [shape = 's32[2]{0}', space=sflag, size = 0x8, scoped, tag = 'scoped memory for tpu_custom_call.1']
    #allocation5 [shape = 'u8[49152]{0}', space=vmem, size = 0xc000, scoped, tag = 'input window, operand 4, single buffered']
    #allocation6 [shape = 's32[1]{0}', space=sflag, size = 0x4, scoped, tag = 'scoped memory for tpu_custom_call.1']
    #allocation7 [shape = 'u8[4096]{0}', space=vmem, size = 0x1000, scoped, tag = 'output window, operand 0']
    %10 = vsyncpa [#allocation3], 0
    %11 = vsyncpa [#allocation6], 0
    %12 = vsyncpa [#allocation4], 0
    %s13 = scalar_lea.sflag [#allocation4], 1
    %14 = vsyncpa %s13, 0
    loop: start=0, step=1, limit=4
    $region2: #{tpu_custom_call.1} parent=1 // loop_pre_header
      _
    $region3: #{tpu_custom_call.1} parent=1 // loop_header
      %s16 = sphi 0, %s20
      %p17 = scmp.ge.s32.totalorder %s16, 4
      %s23 = sphi 0, %s35
      %s24 = sphi 0, %s31
      %s25 = sphi 0, %s23
      %s26 = sphi 0, %s24
      %s27 = sphi 0, %s25
      %s28 = sphi 0, %s26
      %s40 = sphi 0, %s42
      %s43 = sphi 0, %s40
      %s44 = sphi 0, %s43
      %s60 = sphi 0, %s44
      %s68 = sphi 0, %s70
      %s71 = sphi 0, %s68
      %s72 = sphi 0, %s71
      %s88 = sphi 0, %s72
      %s92 = sphi 0, %s92
      %s94 = sphi 0, %s92
      %s95 = sphi 0, %s94
      %s109 = sphi 0, %s95
      %s113 = sphi 0, %s113
      %s115 = sphi 0, %s113
      %s116 = sphi 0, %s115
      %s130 = sphi 0, %s116
      %s134 = sphi 0, %s134
      %s136 = sphi 0, %s134
      %s137 = sphi 0, %s136
      %s151 = sphi 0, %s137
      %s159 = sphi 0, %s161
      %s162 = sphi 0, %s159
      %s163 = sphi 0, %s162
      %s179 = sphi 0, %s163
    $region4: #{tpu_custom_call.1} parent=1 // loop_header_branch
      %19 = sbr.rel (%p17) target = $region8
    $region5: #{tpu_custom_call.1} parent=1 // loop_body
      %s21 = ssub.s32 %s16, 1
      %s22 = ssub.s32 %s16, 2
      %s29 = sadd.s32 1, %s24
      %p30 = scmp.ge.s32.totalorder %s29, 1
      %s31 = scalar_select %p30, 0, %s29
      %s32 = sadd.s32 1, %s23
      %s33 = scalar_select %p30, %s32, %s23
      %p34 = scmp.ge.s32.totalorder %s33, 2
      %s35 = scalar_select %p34, 0, %s33
      %s36 = ssub.s32 %s23, %s35
      %s37 = ssub.s32 %s24, %s31
      %s38 = sor.u32 %s36, %s37
      %p39 = scmp.eq.s32.totalorder %s38, 0
      %s41 = sadd.s32 %s40, 1
      %s42 = scalar_select %p39, %s40, %s41
      %p45 = pneg %p39
      %p46 = scmp.eq.s32.totalorder %s16, 1
      %p47 = por %p45, %p46
      %p48 = scmp.ne.s32.totalorder %s40, %s43
      %p49 = scmp.eq.s32.totalorder %s16, 0
      %p50 = por %p48, %p49
      %p51 = scmp.ne.s32.totalorder %s40, %s43
      %p52 = scmp.eq.s32.totalorder %s21, 1
      %p53 = por %p51, %p52
      %p54 = scmp.ne.s32.totalorder %s43, %s44
      %p55 = scmp.eq.s32.totalorder %s21, 0
      %p56 = por %p54, %p55
      %p57 = scmp.ne.s32.totalorder %s43, %s44
      %p58 = scmp.eq.s32.totalorder %s22, 1
      %p59 = por %p57, %p58
      %p61 = scmp.ne.s32.totalorder %s44, %s60
      %p62 = scmp.eq.s32.totalorder %s22, 0
      %p63 = por %p61, %p62
      %s64 = ssub.s32 %s23, %s35
      %s65 = ssub.s32 %s24, %s31
      %s66 = sor.u32 %s64, %s65
      %p67 = scmp.eq.s32.totalorder %s66, 0
      %s69 = sadd.s32 %s68, 1
      %s70 = scalar_select %p67, %s68, %s69
      %p73 = pneg %p67
      %p74 = scmp.eq.s32.totalorder %s16, 1
      %p75 = por %p73, %p74
      %p76 = scmp.ne.s32.totalorder %s68, %s71
      %p77 = scmp.eq.s32.totalorder %s16, 0
      %p78 = por %p76, %p77
      %p79 = scmp.ne.s32.totalorder %s68, %s71
      %p80 = scmp.eq.s32.totalorder %s21, 1
      %p81 = por %p79, %p80
      %p82 = scmp.ne.s32.totalorder %s71, %s72
      %p83 = scmp.eq.s32.totalorder %s21, 0
      %p84 = por %p82, %p83
      %p85 = scmp.ne.s32.totalorder %s71, %s72
      %p86 = scmp.eq.s32.totalorder %s22, 1
      %p87 = por %p85, %p86
      %p89 = scmp.ne.s32.totalorder %s72, %s88
      %p90 = scmp.eq.s32.totalorder %s22, 0
      %p91 = por %p89, %p90
      %s93 = sadd.s32 %s92, 1
      %p96 = scmp.eq.s32.totalorder %s16, 1
      %p97 = scmp.ne.s32.totalorder %s92, %s94
      %p98 = scmp.eq.s32.totalorder %s16, 0
      %p99 = por %p97, %p98
      %p100 = scmp.ne.s32.totalorder %s92, %s94
      %p101 = scmp.eq.s32.totalorder %s21, 1
      %p102 = por %p100, %p101
      %p103 = scmp.ne.s32.totalorder %s94, %s95
      %p104 = scmp.eq.s32.totalorder %s21, 0
      %p105 = por %p103, %p104
      %p106 = scmp.ne.s32.totalorder %s94, %s95
      %p107 = scmp.eq.s32.totalorder %s22, 1
      %p108 = por %p106, %p107
      %p110 = scmp.ne.s32.totalorder %s95, %s109
      %p111 = scmp.eq.s32.totalorder %s22, 0
      %p112 = por %p110, %p111
      %s114 = sadd.s32 %s113, 1
      %p117 = scmp.eq.s32.totalorder %s16, 1
      %p118 = scmp.ne.s32.totalorder %s113, %s115
      %p119 = scmp.eq.s32.totalorder %s16, 0
      %p120 = por %p118, %p119
      %p121 = scmp.ne.s32.totalorder %s113, %s115
      %p122 = scmp.eq.s32.totalorder %s21, 1
      %p123 = por %p121, %p122
      %p124 = scmp.ne.s32.totalorder %s115, %s116
      %p125 = scmp.eq.s32.totalorder %s21, 0
      %p126 = por %p124, %p125
      %p127 = scmp.ne.s32.totalorder %s115, %s116
      %p128 = scmp.eq.s32.totalorder %s22, 1
      %p129 = por %p127, %p128
      %p131 = scmp.ne.s32.totalorder %s116, %s130
      %p132 = scmp.eq.s32.totalorder %s22, 0
      %p133 = por %p131, %p132
      %s135 = sadd.s32 %s134, 1
      %p138 = scmp.eq.s32.totalorder %s16, 1
      %p139 = scmp.ne.s32.totalorder %s134, %s136
      %p140 = scmp.eq.s32.totalorder %s16, 0
      %p141 = por %p139, %p140
      %p142 = scmp.ne.s32.totalorder %s134, %s136
      %p143 = scmp.eq.s32.totalorder %s21, 1
      %p144 = por %p142, %p143
      %p145 = scmp.ne.s32.totalorder %s136, %s137
      %p146 = scmp.eq.s32.totalorder %s21, 0
      %p147 = por %p145, %p146
      %p148 = scmp.ne.s32.totalorder %s136, %s137
      %p149 = scmp.eq.s32.totalorder %s22, 1
      %p150 = por %p148, %p149
      %p152 = scmp.ne.s32.totalorder %s137, %s151
      %p153 = scmp.eq.s32.totalorder %s22, 0
      %p154 = por %p152, %p153
      %s155 = ssub.s32 %s23, %s35
      %s156 = ssub.s32 %s24, %s31
      %s157 = sor.u32 %s155, %s156
      %p158 = scmp.eq.s32.totalorder %s157, 0
      %s160 = sadd.s32 %s159, 1
      %s161 = scalar_select %p158, %s159, %s160
      %p164 = pneg %p158
      %p165 = scmp.eq.s32.totalorder %s16, 1
      %p166 = por %p164, %p165
      %p167 = scmp.ne.s32.totalorder %s159, %s162
      %p168 = scmp.eq.s32.totalorder %s16, 0
      %p169 = por %p167, %p168
      %p170 = scmp.ne.s32.totalorder %s159, %s162
      %p171 = scmp.eq.s32.totalorder %s21, 1
      %p172 = por %p170, %p171
      %p173 = scmp.ne.s32.totalorder %s162, %s163
      %p174 = scmp.eq.s32.totalorder %s21, 0
      %p175 = por %p173, %p174
      %p176 = scmp.ne.s32.totalorder %s162, %s163
      %p177 = scmp.eq.s32.totalorder %s22, 1
      %p178 = por %p176, %p177
      %p180 = scmp.ne.s32.totalorder %s163, %s179
      %p181 = scmp.eq.s32.totalorder %s22, 0
      %p182 = por %p180, %p181
      %p183 = scmp.le.s32.totalorder 1, %s16
      %p184 = scmp.lt.s32.totalorder %s16, 3
      %p185 = pnand %p183, %p184
      %p186 = pneg %p185
      // Predicated region
      $region9: #{tpu_custom_call.1} parent=5 // pred_check
        _
      $region10: #{tpu_custom_call.1} parent=5 // pred_check_branch
        %188 = sbr.rel (%p185) target = $region12
      $region11: #{tpu_custom_call.1} parent=5 // pred_region
        %s189 = ssub.s32 %s16, 1
        // Predicated region
        $region13: #{tpu_custom_call.1} parent=11 // pred_check
          %p190 = pneg %p105
        $region14: #{tpu_custom_call.1} parent=11 // pred_check_branch
          %192 = sbr.rel (%p190) target = $region16
        $region15: #{tpu_custom_call.1} parent=11 // pred_region
          _
        $region16: #{tpu_custom_call.1} parent=11 // pred_fallthru
          _
        // Predicated region
        $region17: #{tpu_custom_call.1} parent=11 // pred_check
          %p193 = pneg %p126
        $region18: #{tpu_custom_call.1} parent=11 // pred_check_branch
          %195 = sbr.rel (%p193) target = $region20
        $region19: #{tpu_custom_call.1} parent=11 // pred_region
          %s197 = ssub.s32 1536, 1536
          %198 = vsyncadd [#allocation3], %s197
          %s199 = sshll.u32 [#allocation2], 4
          %s200 = int_to_ptr.vmem [resolvable:$true] %s199
          %205 = dma.hbm_to_vmem [thread:$0]  %s3, 1536, %s200, [#allocation3], 512, 512, 32
        $region20: #{tpu_custom_call.1} parent=11 // pred_fallthru
          _
        // Predicated region
        $region21: #{tpu_custom_call.1} parent=11 // pred_check
          %p206 = pneg %p147
        $region22: #{tpu_custom_call.1} parent=11 // pred_check_branch
          %208 = sbr.rel (%p206) target = $region24
        $region23: #{tpu_custom_call.1} parent=11 // pred_region
          %s210 = ssub.s32 1536, 1536
          %211 = vsyncadd [#allocation6], %s210
          %s212 = sshll.u32 [#allocation5], 4
          %s213 = int_to_ptr.vmem [resolvable:$true] %s212
          %218 = dma.hbm_to_vmem [thread:$0]  %s4, 1536, %s213, [#allocation6], 512, 512, 32
        $region24: #{tpu_custom_call.1} parent=11 // pred_fallthru
          _
      $region12: #{tpu_custom_call.1} parent=5 // pred_fallthru
        _
      %p219 = scmp.lt.s32.totalorder %s16, 2
      // Predicated region
      $region25: #{tpu_custom_call.1} parent=5 // pred_check
        %p220 = pneg %p219
      $region26: #{tpu_custom_call.1} parent=5 // pred_check_branch
        %222 = sbr.rel (%p220) target = $region28
      $region27: #{tpu_custom_call.1} parent=5 // pred_region
        // Predicated region
        $region29: #{tpu_custom_call.1} parent=27 // pred_check
          %p223 = pneg %p50
        $region30: #{tpu_custom_call.1} parent=27 // pred_check_branch
          %225 = sbr.rel (%p223) target = $region32
        $region31: #{tpu_custom_call.1} parent=27 // pred_region
          %s226 = smul.u32 4, %s24
          %p227 = scmp.lt.s32.totalorder %s23, 1
          %s228 = scalar_select %p227, %s23, 1
          %p229 = scmp.lt.s32.totalorder %s226, 3
          %s230 = scalar_select %p229, %s226, 3
          %s231 = smul.addr %s228, 4
          %s232 = sadd.s32 %s230, %s231
          %s233 = scalar_lea.vmem %s0, %s232
          %s234 = smul.u32 4, %s24
        $region32: #{tpu_custom_call.1} parent=27 // pred_fallthru
          _
        // Predicated region
        $region33: #{tpu_custom_call.1} parent=27 // pred_check
          %p235 = pneg %p78
        $region34: #{tpu_custom_call.1} parent=27 // pred_check_branch
          %237 = sbr.rel (%p235) target = $region36
        $region35: #{tpu_custom_call.1} parent=27 // pred_region
          %p238 = scmp.lt.s32.totalorder %s23, 1
          %s239 = scalar_select %p238, %s23, 1
          %p240 = scmp.lt.s32.totalorder %s24, 0
          %s241 = scalar_select %p240, %s24, 0
          %s242 = smul.addr %s241, 3
          %s243 = smul.addr %s239, 3
          %s244 = sadd.s32 %s242, %s243
          %s245 = smul.addr %s244, 8
          %s246 = scalar_lea.vmem %s1, %s245
        $region36: #{tpu_custom_call.1} parent=27 // pred_fallthru
          _
      $region28: #{tpu_custom_call.1} parent=5 // pred_fallthru
        _
      %p247 = scmp.le.s32.totalorder 1, %s16
      %p248 = scmp.lt.s32.totalorder %s16, 3
      %p249 = pnand %p247, %p248
      %p250 = pneg %p249
      // Predicated region
      $region37: #{tpu_custom_call.1} parent=5 // pred_check
        _
      $region38: #{tpu_custom_call.1} parent=5 // pred_check_branch
        %252 = sbr.rel (%p249) target = $region40
      $region39: #{tpu_custom_call.1} parent=5 // pred_region
        %s253 = ssub.s32 %s16, 1
        // Predicated region
        $region41: #{tpu_custom_call.1} parent=39 // pred_check
          %p254 = pneg %p126
        $region42: #{tpu_custom_call.1} parent=39 // pred_check_branch
          %256 = sbr.rel (%p254) target = $region44
        $region43: #{tpu_custom_call.1} parent=39 // pred_region
          %257 = dma.done [#allocation3], 1536
        $region44: #{tpu_custom_call.1} parent=39 // pred_fallthru
          _
        // Predicated region
        $region45: #{tpu_custom_call.1} parent=39 // pred_check
          %p258 = pneg %p147
        $region46: #{tpu_custom_call.1} parent=39 // pred_check_branch
          %260 = sbr.rel (%p258) target = $region48
        $region47: #{tpu_custom_call.1} parent=39 // pred_region
          %261 = dma.done [#allocation6], 1536
        $region48: #{tpu_custom_call.1} parent=39 // pred_fallthru
          _
        %s262 = smul.u32 4, %s26
        %p263 = scmp.lt.s32.totalorder %s25, 1
        %s264 = scalar_select %p263, %s25, 1
        %p265 = scmp.lt.s32.totalorder %s262, 3
        %s266 = scalar_select %p265, %s262, 3
        %s267 = smul.addr %s264, 4
        %s268 = sadd.s32 %s266, %s267
        %s269 = scalar_lea.vmem %s0, %s268
        %p270 = pneg %p56
        %p271 = pneg %p53
        %p272 = scmp.lt.s32.totalorder %s25, 1
        %s273 = scalar_select %p272, %s25, 1
        %p274 = scmp.lt.s32.totalorder %s26, 0
        %s275 = scalar_select %p274, %s26, 0
        %s276 = smul.addr %s275, 3
        %s277 = smul.addr %s273, 3
        %s278 = sadd.s32 %s276, %s277
        %s279 = smul.addr %s278, 8
        %s280 = scalar_lea.vmem %s1, %s279
        %p281 = pneg %p84
        %p282 = pneg %p81
        %p283 = pneg %p105
        %p284 = pneg %p102
        %p285 = pneg %p126
        %p286 = pneg %p123
        %p287 = pneg %p147
        %p288 = pneg %p144
        %p289 = pneg %p175
        %p290 = pneg %p172
        %s291 = sand.u32 %s162, 1
        %s292 = scalar_lea.sflag [#allocation4], %s291
        %s293 = sand.u32 %s162, 1
        %s294 = smul.addr %s293, 4
        %s295 = scalar_lea.vmem [#allocation7], %s294
        %s296 = smul.u32 4, %s26
        %p297 = scmp.lt.s32.totalorder %s25, 1
        %s298 = scalar_select %p297, %s25, 1
        %p299 = scmp.lt.s32.totalorder %s296, 3
        %s300 = scalar_select %p299, %s296, 3
        %s301 = smul.addr %s298, 4
        %s302 = sadd.s32 %s300, %s301
        %s303 = scalar_lea.vmem %s0, %s302
        %s304 = smul.u32 4, %s26
        %p305 = scmp.lt.s32.totalorder %s25, 1
        %s306 = scalar_select %p305, %s25, 1
        %p307 = scmp.lt.s32.totalorder %s26, 0
        %s308 = scalar_select %p307, %s26, 0
        %s309 = smul.addr %s308, 3
        %s310 = smul.addr %s306, 3
        %s311 = sadd.s32 %s309, %s310
        %s312 = smul.addr %s311, 8
        %s313 = scalar_lea.vmem %s1, %s312
        %s314 = smul.u32 4, %s26
        %v315 = vld [vmem:[%s303] sm:$0xf]
        %v316 = vfloor.f32 %v315
        %v317 = vsub.f32 %v315, %v316
        %v318 = vcvt.f32.s32.to.zero.pseudo %v316
        %v319 = vand.u32 %v318, 511
        %v320 = vlaneseq
        %v321 = vshrl.u32 %v320, 7
        %v322 = vadd.s32 %v321, 8
        %v323 = vadd.s32 %v321, 16
        %v324 = vadd.s32 %v321, 24
        %v325 = vadd.s32 %v321, 32
        %v326 = vadd.s32 %v321, 40
        %v327 = vadd.s32 %v321, 48
        %v328 = vadd.s32 %v321, 56
        %v329 = vadd.s32 %v321, 64
        %v330 = vadd.s32 %v321, 72
        %v331 = vadd.s32 %v321, 80
        %v332 = vadd.s32 %v321, 88
        %v333 = vadd.s32 %v321, 96
        %v334 = vadd.s32 %v321, 104
        %v335 = vadd.s32 %v321, 112
        %v336 = vadd.s32 %v321, 120
        %v337 = vadd.s32 %v321, 128
        %v338 = vadd.s32 %v321, 136
        %v339 = vadd.s32 %v321, 144
        %v340 = vadd.s32 %v321, 152
        %v341 = vadd.s32 %v321, 160
        %v342 = vadd.s32 %v321, 168
        %v343 = vadd.s32 %v321, 176
        %v344 = vadd.s32 %v321, 184
        %v345 = vadd.s32 %v321, 192
        %v346 = vadd.s32 %v321, 200
        %v347 = vadd.s32 %v321, 208
        %v348 = vadd.s32 %v321, 216
        %v349 = vadd.s32 %v321, 224
        %v350 = vadd.s32 %v321, 232
        %v351 = vadd.s32 %v321, 240
        %v352 = vadd.s32 %v321, 248
        %v353 = vadd.s32 %v321, 256
        %v354 = vadd.s32 %v321, 264
        %v355 = vadd.s32 %v321, 272
        %v356 = vadd.s32 %v321, 280
        %v357 = vadd.s32 %v321, 288
        %v358 = vadd.s32 %v321, 296
        %v359 = vadd.s32 %v321, 304
        %v360 = vadd.s32 %v321, 312
        %v361 = vadd.s32 %v321, 320
        %v362 = vadd.s32 %v321, 328
        %v363 = vadd.s32 %v321, 336
        %v364 = vadd.s32 %v321, 344
        %v365 = vadd.s32 %v321, 352
        %v366 = vadd.s32 %v321, 360
        %v367 = vadd.s32 %v321, 368
        %v368 = vadd.s32 %v321, 376
        %v369 = vadd.s32 %v321, 384
        %v370 = vadd.s32 %v321, 392
        %v371 = vadd.s32 %v321, 400
        %v372 = vadd.s32 %v321, 408
        %v373 = vadd.s32 %v321, 416
        %v374 = vadd.s32 %v321, 424
        %v375 = vadd.s32 %v321, 432
        %v376 = vadd.s32 %v321, 440
        %v377 = vadd.s32 %v321, 448
        %v378 = vadd.s32 %v321, 456
        %v379 = vadd.s32 %v321, 464
        %v380 = vadd.s32 %v321, 472
        %v381 = vadd.s32 %v321, 480
        %v382 = vadd.s32 %v321, 488
        %v383 = vadd.s32 %v321, 496
        %v384 = vadd.s32 %v321, 504
        %v385 = vlaneseq
        %v386 = vshrl.u32 %v385, 7
        %v387 = vsub.s32 0, %v386
        %v388 = vrot.slane %v319, %v387
        %v389 = vlaneseq
        %v390 = vshrl.u32 %v389, 7
        %v391 = vsub.s32 1, %v390
        %v392 = vrot.slane %v319, %v391
        %v393 = vlaneseq
        %v394 = vshrl.u32 %v393, 7
        %v395 = vsub.s32 2, %v394
        %v396 = vrot.slane %v319, %v395
        %v397 = vlaneseq
        %v398 = vshrl.u32 %v397, 7
        %v399 = vsub.s32 3, %v398
        %v400 = vrot.slane %v319, %v399
        %vm401 = vcmp.eq.s32.totalorder %v321, %v388
        %vm402 = vcmp.eq.s32.totalorder %v321, %v392
        %vm403 = vcmp.eq.s32.totalorder %v321, %v396
        %vm404 = vcmp.eq.s32.totalorder %v321, %v400
        %vm405 = vcmp.eq.s32.totalorder %v322, %v388
        %vm406 = vcmp.eq.s32.totalorder %v322, %v392
        %vm407 = vcmp.eq.s32.totalorder %v322, %v396
        %vm408 = vcmp.eq.s32.totalorder %v322, %v400
        %vm409 = vcmp.eq.s32.totalorder %v323, %v388
        %vm410 = vcmp.eq.s32.totalorder %v323, %v392
        %vm411 = vcmp.eq.s32.totalorder %v323, %v396
        %vm412 = vcmp.eq.s32.totalorder %v323, %v400
        %vm413 = vcmp.eq.s32.totalorder %v324, %v388
        %vm414 = vcmp.eq.s32.totalorder %v324, %v392
        %vm415 = vcmp.eq.s32.totalorder %v324, %v396
        %vm416 = vcmp.eq.s32.totalorder %v324, %v400
        %vm417 = vcmp.eq.s32.totalorder %v325, %v388
        %vm418 = vcmp.eq.s32.totalorder %v325, %v392
        %vm419 = vcmp.eq.s32.totalorder %v325, %v396
        %vm420 = vcmp.eq.s32.totalorder %v325, %v400
        %vm421 = vcmp.eq.s32.totalorder %v326, %v388
        %vm422 = vcmp.eq.s32.totalorder %v326, %v392
        %vm423 = vcmp.eq.s32.totalorder %v326, %v396
        %vm424 = vcmp.eq.s32.totalorder %v326, %v400
        %vm425 = vcmp.eq.s32.totalorder %v327, %v388
        %vm426 = vcmp.eq.s32.totalorder %v327, %v392
        %vm427 = vcmp.eq.s32.totalorder %v327, %v396
        %vm428 = vcmp.eq.s32.totalorder %v327, %v400
        %vm429 = vcmp.eq.s32.totalorder %v328, %v388
        %vm430 = vcmp.eq.s32.totalorder %v328, %v392
        %vm431 = vcmp.eq.s32.totalorder %v328, %v396
        %vm432 = vcmp.eq.s32.totalorder %v328, %v400
        %vm433 = vcmp.eq.s32.totalorder %v329, %v388
        %vm434 = vcmp.eq.s32.totalorder %v329, %v392
        %vm435 = vcmp.eq.s32.totalorder %v329, %v396
        %vm436 = vcmp.eq.s32.totalorder %v329, %v400
        %vm437 = vcmp.eq.s32.totalorder %v330, %v388
        %vm438 = vcmp.eq.s32.totalorder %v330, %v392
        %vm439 = vcmp.eq.s32.totalorder %v330, %v396
        %vm440 = vcmp.eq.s32.totalorder %v330, %v400
        %vm441 = vcmp.eq.s32.totalorder %v331, %v388
        %vm442 = vcmp.eq.s32.totalorder %v331, %v392
        %vm443 = vcmp.eq.s32.totalorder %v331, %v396
        %vm444 = vcmp.eq.s32.totalorder %v331, %v400
        %vm445 = vcmp.eq.s32.totalorder %v332, %v388
        %vm446 = vcmp.eq.s32.totalorder %v332, %v392
        %vm447 = vcmp.eq.s32.totalorder %v332, %v396
        %vm448 = vcmp.eq.s32.totalorder %v332, %v400
        %vm449 = vcmp.eq.s32.totalorder %v333, %v388
        %vm450 = vcmp.eq.s32.totalorder %v333, %v392
        %vm451 = vcmp.eq.s32.totalorder %v333, %v396
        %vm452 = vcmp.eq.s32.totalorder %v333, %v400
        %vm453 = vcmp.eq.s32.totalorder %v334, %v388
        %vm454 = vcmp.eq.s32.totalorder %v334, %v392
        %vm455 = vcmp.eq.s32.totalorder %v334, %v396
        %vm456 = vcmp.eq.s32.totalorder %v334, %v400
        %vm457 = vcmp.eq.s32.totalorder %v335, %v388
        %vm458 = vcmp.eq.s32.totalorder %v335, %v392
        %vm459 = vcmp.eq.s32.totalorder %v335, %v396
        %vm460 = vcmp.eq.s32.totalorder %v335, %v400
        %vm461 = vcmp.eq.s32.totalorder %v336, %v388
        %vm462 = vcmp.eq.s32.totalorder %v336, %v392
        %vm463 = vcmp.eq.s32.totalorder %v336, %v396
        %vm464 = vcmp.eq.s32.totalorder %v336, %v400
        %vm465 = vcmp.eq.s32.totalorder %v337, %v388
        %vm466 = vcmp.eq.s32.totalorder %v337, %v392
        %vm467 = vcmp.eq.s32.totalorder %v337, %v396
        %vm468 = vcmp.eq.s32.totalorder %v337, %v400
        %vm469 = vcmp.eq.s32.totalorder %v338, %v388
        %vm470 = vcmp.eq.s32.totalorder %v338, %v392
        %vm471 = vcmp.eq.s32.totalorder %v338, %v396
        %vm472 = vcmp.eq.s32.totalorder %v338, %v400
        %vm473 = vcmp.eq.s32.totalorder %v339, %v388
        %vm474 = vcmp.eq.s32.totalorder %v339, %v392
        %vm475 = vcmp.eq.s32.totalorder %v339, %v396
        %vm476 = vcmp.eq.s32.totalorder %v339, %v400
        %vm477 = vcmp.eq.s32.totalorder %v340, %v388
        %vm478 = vcmp.eq.s32.totalorder %v340, %v392
        %vm479 = vcmp.eq.s32.totalorder %v340, %v396
        %vm480 = vcmp.eq.s32.totalorder %v340, %v400
        %vm481 = vcmp.eq.s32.totalorder %v341, %v388
        %vm482 = vcmp.eq.s32.totalorder %v341, %v392
        %vm483 = vcmp.eq.s32.totalorder %v341, %v396
        %vm484 = vcmp.eq.s32.totalorder %v341, %v400
        %vm485 = vcmp.eq.s32.totalorder %v342, %v388
        %vm486 = vcmp.eq.s32.totalorder %v342, %v392
        %vm487 = vcmp.eq.s32.totalorder %v342, %v396
        %vm488 = vcmp.eq.s32.totalorder %v342, %v400
        %vm489 = vcmp.eq.s32.totalorder %v343, %v388
        %vm490 = vcmp.eq.s32.totalorder %v343, %v392
        %vm491 = vcmp.eq.s32.totalorder %v343, %v396
        %vm492 = vcmp.eq.s32.totalorder %v343, %v400
        %vm493 = vcmp.eq.s32.totalorder %v344, %v388
        %vm494 = vcmp.eq.s32.totalorder %v344, %v392
        %vm495 = vcmp.eq.s32.totalorder %v344, %v396
        %vm496 = vcmp.eq.s32.totalorder %v344, %v400
        %vm497 = vcmp.eq.s32.totalorder %v345, %v388
        %vm498 = vcmp.eq.s32.totalorder %v345, %v392
        %vm499 = vcmp.eq.s32.totalorder %v345, %v396
        %vm500 = vcmp.eq.s32.totalorder %v345, %v400
        %vm501 = vcmp.eq.s32.totalorder %v346, %v388
        %vm502 = vcmp.eq.s32.totalorder %v346, %v392
        %vm503 = vcmp.eq.s32.totalorder %v346, %v396
        %vm504 = vcmp.eq.s32.totalorder %v346, %v400
        %vm505 = vcmp.eq.s32.totalorder %v347, %v388
        %vm506 = vcmp.eq.s32.totalorder %v347, %v392
        %vm507 = vcmp.eq.s32.totalorder %v347, %v396
        %vm508 = vcmp.eq.s32.totalorder %v347, %v400
        %vm509 = vcmp.eq.s32.totalorder %v348, %v388
        %vm510 = vcmp.eq.s32.totalorder %v348, %v392
        %vm511 = vcmp.eq.s32.totalorder %v348, %v396
        %vm512 = vcmp.eq.s32.totalorder %v348, %v400
        %vm513 = vcmp.eq.s32.totalorder %v349, %v388
        %vm514 = vcmp.eq.s32.totalorder %v349, %v392
        %vm515 = vcmp.eq.s32.totalorder %v349, %v396
        %vm516 = vcmp.eq.s32.totalorder %v349, %v400
        %vm517 = vcmp.eq.s32.totalorder %v350, %v388
        %vm518 = vcmp.eq.s32.totalorder %v350, %v392
        %vm519 = vcmp.eq.s32.totalorder %v350, %v396
        %vm520 = vcmp.eq.s32.totalorder %v350, %v400
        %vm521 = vcmp.eq.s32.totalorder %v351, %v388
        %vm522 = vcmp.eq.s32.totalorder %v351, %v392
        %vm523 = vcmp.eq.s32.totalorder %v351, %v396
        %vm524 = vcmp.eq.s32.totalorder %v351, %v400
        %vm525 = vcmp.eq.s32.totalorder %v352, %v388
        %vm526 = vcmp.eq.s32.totalorder %v352, %v392
        %vm527 = vcmp.eq.s32.totalorder %v352, %v396
        %vm528 = vcmp.eq.s32.totalorder %v352, %v400
        %vm529 = vcmp.eq.s32.totalorder %v353, %v388
        %vm530 = vcmp.eq.s32.totalorder %v353, %v392
        %vm531 = vcmp.eq.s32.totalorder %v353, %v396
        %vm532 = vcmp.eq.s32.totalorder %v353, %v400
        %vm533 = vcmp.eq.s32.totalorder %v354, %v388
        %vm534 = vcmp.eq.s32.totalorder %v354, %v392
        %vm535 = vcmp.eq.s32.totalorder %v354, %v396
        %vm536 = vcmp.eq.s32.totalorder %v354, %v400
        %vm537 = vcmp.eq.s32.totalorder %v355, %v388
        %vm538 = vcmp.eq.s32.totalorder %v355, %v392
        %vm539 = vcmp.eq.s32.totalorder %v355, %v396
        %vm540 = vcmp.eq.s32.totalorder %v355, %v400
        %vm541 = vcmp.eq.s32.totalorder %v356, %v388
        %vm542 = vcmp.eq.s32.totalorder %v356, %v392
        %vm543 = vcmp.eq.s32.totalorder %v356, %v396
        %vm544 = vcmp.eq.s32.totalorder %v356, %v400
        %vm545 = vcmp.eq.s32.totalorder %v357, %v388
        %vm546 = vcmp.eq.s32.totalorder %v357, %v392
        %vm547 = vcmp.eq.s32.totalorder %v357, %v396
        %vm548 = vcmp.eq.s32.totalorder %v357, %v400
        %vm549 = vcmp.eq.s32.totalorder %v358, %v388
        %vm550 = vcmp.eq.s32.totalorder %v358, %v392
        %vm551 = vcmp.eq.s32.totalorder %v358, %v396
        %vm552 = vcmp.eq.s32.totalorder %v358, %v400
        %vm553 = vcmp.eq.s32.totalorder %v359, %v388
        %vm554 = vcmp.eq.s32.totalorder %v359, %v392
        %vm555 = vcmp.eq.s32.totalorder %v359, %v396
        %vm556 = vcmp.eq.s32.totalorder %v359, %v400
        %vm557 = vcmp.eq.s32.totalorder %v360, %v388
        %vm558 = vcmp.eq.s32.totalorder %v360, %v392
        %vm559 = vcmp.eq.s32.totalorder %v360, %v396
        %vm560 = vcmp.eq.s32.totalorder %v360, %v400
        %vm561 = vcmp.eq.s32.totalorder %v361, %v388
        %vm562 = vcmp.eq.s32.totalorder %v361, %v392
        %vm563 = vcmp.eq.s32.totalorder %v361, %v396
        %vm564 = vcmp.eq.s32.totalorder %v361, %v400
        %vm565 = vcmp.eq.s32.totalorder %v362, %v388
        %vm566 = vcmp.eq.s32.totalorder %v362, %v392
        %vm567 = vcmp.eq.s32.totalorder %v362, %v396
        %vm568 = vcmp.eq.s32.totalorder %v362, %v400
        %vm569 = vcmp.eq.s32.totalorder %v363, %v388
        %vm570 = vcmp.eq.s32.totalorder %v363, %v392
        %vm571 = vcmp.eq.s32.totalorder %v363, %v396
        %vm572 = vcmp.eq.s32.totalorder %v363, %v400
        %vm573 = vcmp.eq.s32.totalorder %v364, %v388
        %vm574 = vcmp.eq.s32.totalorder %v364, %v392
        %vm575 = vcmp.eq.s32.totalorder %v364, %v396
        %vm576 = vcmp.eq.s32.totalorder %v364, %v400
        %vm577 = vcmp.eq.s32.totalorder %v365, %v388
        %vm578 = vcmp.eq.s32.totalorder %v365, %v392
        %vm579 = vcmp.eq.s32.totalorder %v365, %v396
        %vm580 = vcmp.eq.s32.totalorder %v365, %v400
        %vm581 = vcmp.eq.s32.totalorder %v366, %v388
        %vm582 = vcmp.eq.s32.totalorder %v366, %v392
        %vm583 = vcmp.eq.s32.totalorder %v366, %v396
        %vm584 = vcmp.eq.s32.totalorder %v366, %v400
        %vm585 = vcmp.eq.s32.totalorder %v367, %v388
        %vm586 = vcmp.eq.s32.totalorder %v367, %v392
        %vm587 = vcmp.eq.s32.totalorder %v367, %v396
        %vm588 = vcmp.eq.s32.totalorder %v367, %v400
        %vm589 = vcmp.eq.s32.totalorder %v368, %v388
        %vm590 = vcmp.eq.s32.totalorder %v368, %v392
        %vm591 = vcmp.eq.s32.totalorder %v368, %v396
        %vm592 = vcmp.eq.s32.totalorder %v368, %v400
        %vm593 = vcmp.eq.s32.totalorder %v369, %v388
        %vm594 = vcmp.eq.s32.totalorder %v369, %v392
        %vm595 = vcmp.eq.s32.totalorder %v369, %v396
        %vm596 = vcmp.eq.s32.totalorder %v369, %v400
        %vm597 = vcmp.eq.s32.totalorder %v370, %v388
        %vm598 = vcmp.eq.s32.totalorder %v370, %v392
        %vm599 = vcmp.eq.s32.totalorder %v370, %v396
        %vm600 = vcmp.eq.s32.totalorder %v370, %v400
        %vm601 = vcmp.eq.s32.totalorder %v371, %v388
        %vm602 = vcmp.eq.s32.totalorder %v371, %v392
        %vm603 = vcmp.eq.s32.totalorder %v371, %v396
        %vm604 = vcmp.eq.s32.totalorder %v371, %v400
        %vm605 = vcmp.eq.s32.totalorder %v372, %v388
        %vm606 = vcmp.eq.s32.totalorder %v372, %v392
        %vm607 = vcmp.eq.s32.totalorder %v372, %v396
        %vm608 = vcmp.eq.s32.totalorder %v372, %v400
        %vm609 = vcmp.eq.s32.totalorder %v373, %v388
        %vm610 = vcmp.eq.s32.totalorder %v373, %v392
        %vm611 = vcmp.eq.s32.totalorder %v373, %v396
        %vm612 = vcmp.eq.s32.totalorder %v373, %v400
        %vm613 = vcmp.eq.s32.totalorder %v374, %v388
        %vm614 = vcmp.eq.s32.totalorder %v374, %v392
        %vm615 = vcmp.eq.s32.totalorder %v374, %v396
        %vm616 = vcmp.eq.s32.totalorder %v374, %v400
        %vm617 = vcmp.eq.s32.totalorder %v375, %v388
        %vm618 = vcmp.eq.s32.totalorder %v375, %v392
        %vm619 = vcmp.eq.s32.totalorder %v375, %v396
        %vm620 = vcmp.eq.s32.totalorder %v375, %v400
        %vm621 = vcmp.eq.s32.totalorder %v376, %v388
        %vm622 = vcmp.eq.s32.totalorder %v376, %v392
        %vm623 = vcmp.eq.s32.totalorder %v376, %v396
        %vm624 = vcmp.eq.s32.totalorder %v376, %v400
        %vm625 = vcmp.eq.s32.totalorder %v377, %v388
        %vm626 = vcmp.eq.s32.totalorder %v377, %v392
        %vm627 = vcmp.eq.s32.totalorder %v377, %v396
        %vm628 = vcmp.eq.s32.totalorder %v377, %v400
        %vm629 = vcmp.eq.s32.totalorder %v378, %v388
        %vm630 = vcmp.eq.s32.totalorder %v378, %v392
        %vm631 = vcmp.eq.s32.totalorder %v378, %v396
        %vm632 = vcmp.eq.s32.totalorder %v378, %v400
        %vm633 = vcmp.eq.s32.totalorder %v379, %v388
        %vm634 = vcmp.eq.s32.totalorder %v379, %v392
        %vm635 = vcmp.eq.s32.totalorder %v379, %v396
        %vm636 = vcmp.eq.s32.totalorder %v379, %v400
        %vm637 = vcmp.eq.s32.totalorder %v380, %v388
        %vm638 = vcmp.eq.s32.totalorder %v380, %v392
        %vm639 = vcmp.eq.s32.totalorder %v380, %v396
        %vm640 = vcmp.eq.s32.totalorder %v380, %v400
        %vm641 = vcmp.eq.s32.totalorder %v381, %v388
        %vm642 = vcmp.eq.s32.totalorder %v381, %v392
        %vm643 = vcmp.eq.s32.totalorder %v381, %v396
        %vm644 = vcmp.eq.s32.totalorder %v381, %v400
        %vm645 = vcmp.eq.s32.totalorder %v382, %v388
        %vm646 = vcmp.eq.s32.totalorder %v382, %v392
        %vm647 = vcmp.eq.s32.totalorder %v382, %v396
        %vm648 = vcmp.eq.s32.totalorder %v382, %v400
        %vm649 = vcmp.eq.s32.totalorder %v383, %v388
        %vm650 = vcmp.eq.s32.totalorder %v383, %v392
        %vm651 = vcmp.eq.s32.totalorder %v383, %v396
        %vm652 = vcmp.eq.s32.totalorder %v383, %v400
        %vm653 = vcmp.eq.s32.totalorder %v384, %v388
        %vm654 = vcmp.eq.s32.totalorder %v384, %v392
        %vm655 = vcmp.eq.s32.totalorder %v384, %v396
        %vm656 = vcmp.eq.s32.totalorder %v384, %v400
        %v657 = vsel %vm401, 1, 0
        %v658 = vsel %vm402, 1, 0
        %v659 = vsel %vm403, 1, 0
        %v660 = vsel %vm404, 1, 0
        %v661 = vsel %vm405, 1, 0
        %v662 = vsel %vm406, 1, 0
        %v663 = vsel %vm407, 1, 0
        %v664 = vsel %vm408, 1, 0
        %v665 = vsel %vm409, 1, 0
        %v666 = vsel %vm410, 1, 0
        %v667 = vsel %vm411, 1, 0
        %v668 = vsel %vm412, 1, 0
        %v669 = vsel %vm413, 1, 0
        %v670 = vsel %vm414, 1, 0
        %v671 = vsel %vm415, 1, 0
        %v672 = vsel %vm416, 1, 0
        %v673 = vsel %vm417, 1, 0
        %v674 = vsel %vm418, 1, 0
        %v675 = vsel %vm419, 1, 0
        %v676 = vsel %vm420, 1, 0
        %v677 = vsel %vm421, 1, 0
        %v678 = vsel %vm422, 1, 0
        %v679 = vsel %vm423, 1, 0
        %v680 = vsel %vm424, 1, 0
        %v681 = vsel %vm425, 1, 0
        %v682 = vsel %vm426, 1, 0
        %v683 = vsel %vm427, 1, 0
        %v684 = vsel %vm428, 1, 0
        %v685 = vsel %vm429, 1, 0
        %v686 = vsel %vm430, 1, 0
        %v687 = vsel %vm431, 1, 0
        %v688 = vsel %vm432, 1, 0
        %v689 = vsel %vm433, 1, 0
        %v690 = vsel %vm434, 1, 0
        %v691 = vsel %vm435, 1, 0
        %v692 = vsel %vm436, 1, 0
        %v693 = vsel %vm437, 1, 0
        %v694 = vsel %vm438, 1, 0
        %v695 = vsel %vm439, 1, 0
        %v696 = vsel %vm440, 1, 0
        %v697 = vsel %vm441, 1, 0
        %v698 = vsel %vm442, 1, 0
        %v699 = vsel %vm443, 1, 0
        %v700 = vsel %vm444, 1, 0
        %v701 = vsel %vm445, 1, 0
        %v702 = vsel %vm446, 1, 0
        %v703 = vsel %vm447, 1, 0
        %v704 = vsel %vm448, 1, 0
        %v705 = vsel %vm449, 1, 0
        %v706 = vsel %vm450, 1, 0
        %v707 = vsel %vm451, 1, 0
        %v708 = vsel %vm452, 1, 0
        %v709 = vsel %vm453, 1, 0
        %v710 = vsel %vm454, 1, 0
        %v711 = vsel %vm455, 1, 0
        %v712 = vsel %vm456, 1, 0
        %v713 = vsel %vm457, 1, 0
        %v714 = vsel %vm458, 1, 0
        %v715 = vsel %vm459, 1, 0
        %v716 = vsel %vm460, 1, 0
        %v717 = vsel %vm461, 1, 0
        %v718 = vsel %vm462, 1, 0
        %v719 = vsel %vm463, 1, 0
        %v720 = vsel %vm464, 1, 0
        %v721 = vsel %vm465, 1, 0
        %v722 = vsel %vm466, 1, 0
        %v723 = vsel %vm467, 1, 0
        %v724 = vsel %vm468, 1, 0
        %v725 = vsel %vm469, 1, 0
        %v726 = vsel %vm470, 1, 0
        %v727 = vsel %vm471, 1, 0
        %v728 = vsel %vm472, 1, 0
        %v729 = vsel %vm473, 1, 0
        %v730 = vsel %vm474, 1, 0
        %v731 = vsel %vm475, 1, 0
        %v732 = vsel %vm476, 1, 0
        %v733 = vsel %vm477, 1, 0
        %v734 = vsel %vm478, 1, 0
        %v735 = vsel %vm479, 1, 0
        %v736 = vsel %vm480, 1, 0
        %v737 = vsel %vm481, 1, 0
        %v738 = vsel %vm482, 1, 0
        %v739 = vsel %vm483, 1, 0
        %v740 = vsel %vm484, 1, 0
        %v741 = vsel %vm485, 1, 0
        %v742 = vsel %vm486, 1, 0
        %v743 = vsel %vm487, 1, 0
        %v744 = vsel %vm488, 1, 0
        %v745 = vsel %vm489, 1, 0
        %v746 = vsel %vm490, 1, 0
        %v747 = vsel %vm491, 1, 0
        %v748 = vsel %vm492, 1, 0
        %v749 = vsel %vm493, 1, 0
        %v750 = vsel %vm494, 1, 0
        %v751 = vsel %vm495, 1, 0
        %v752 = vsel %vm496, 1, 0
        %v753 = vsel %vm497, 1, 0
        %v754 = vsel %vm498, 1, 0
        %v755 = vsel %vm499, 1, 0
        %v756 = vsel %vm500, 1, 0
        %v757 = vsel %vm501, 1, 0
        %v758 = vsel %vm502, 1, 0
        %v759 = vsel %vm503, 1, 0
        %v760 = vsel %vm504, 1, 0
        %v761 = vsel %vm505, 1, 0
        %v762 = vsel %vm506, 1, 0
        %v763 = vsel %vm507, 1, 0
        %v764 = vsel %vm508, 1, 0
        %v765 = vsel %vm509, 1, 0
        %v766 = vsel %vm510, 1, 0
        %v767 = vsel %vm511, 1, 0
        %v768 = vsel %vm512, 1, 0
        %v769 = vsel %vm513, 1, 0
        %v770 = vsel %vm514, 1, 0
        %v771 = vsel %vm515, 1, 0
        %v772 = vsel %vm516, 1, 0
        %v773 = vsel %vm517, 1, 0
        %v774 = vsel %vm518, 1, 0
        %v775 = vsel %vm519, 1, 0
        %v776 = vsel %vm520, 1, 0
        %v777 = vsel %vm521, 1, 0
        %v778 = vsel %vm522, 1, 0
        %v779 = vsel %vm523, 1, 0
        %v780 = vsel %vm524, 1, 0
        %v781 = vsel %vm525, 1, 0
        %v782 = vsel %vm526, 1, 0
        %v783 = vsel %vm527, 1, 0
        %v784 = vsel %vm528, 1, 0
        %v785 = vsel %vm529, 1, 0
        %v786 = vsel %vm530, 1, 0
        %v787 = vsel %vm531, 1, 0
        %v788 = vsel %vm532, 1, 0
        %v789 = vsel %vm533, 1, 0
        %v790 = vsel %vm534, 1, 0
        %v791 = vsel %vm535, 1, 0
        %v792 = vsel %vm536, 1, 0
        %v793 = vsel %vm537, 1, 0
        %v794 = vsel %vm538, 1, 0
        %v795 = vsel %vm539, 1, 0
        %v796 = vsel %vm540, 1, 0
        %v797 = vsel %vm541, 1, 0
        %v798 = vsel %vm542, 1, 0
        %v799 = vsel %vm543, 1, 0
        %v800 = vsel %vm544, 1, 0
        %v801 = vsel %vm545, 1, 0
        %v802 = vsel %vm546, 1, 0
        %v803 = vsel %vm547, 1, 0
        %v804 = vsel %vm548, 1, 0
        %v805 = vsel %vm549, 1, 0
        %v806 = vsel %vm550, 1, 0
        %v807 = vsel %vm551, 1, 0
        %v808 = vsel %vm552, 1, 0
        %v809 = vsel %vm553, 1, 0
        %v810 = vsel %vm554, 1, 0
        %v811 = vsel %vm555, 1, 0
        %v812 = vsel %vm556, 1, 0
        %v813 = vsel %vm557, 1, 0
        %v814 = vsel %vm558, 1, 0
        %v815 = vsel %vm559, 1, 0
        %v816 = vsel %vm560, 1, 0
        %v817 = vsel %vm561, 1, 0
        %v818 = vsel %vm562, 1, 0
        %v819 = vsel %vm563, 1, 0
        %v820 = vsel %vm564, 1, 0
        %v821 = vsel %vm565, 1, 0
        %v822 = vsel %vm566, 1, 0
        %v823 = vsel %vm567, 1, 0
        %v824 = vsel %vm568, 1, 0
        %v825 = vsel %vm569, 1, 0
        %v826 = vsel %vm570, 1, 0
        %v827 = vsel %vm571, 1, 0
        %v828 = vsel %vm572, 1, 0
        %v829 = vsel %vm573, 1, 0
        %v830 = vsel %vm574, 1, 0
        %v831 = vsel %vm575, 1, 0
        %v832 = vsel %vm576, 1, 0
        %v833 = vsel %vm577, 1, 0
        %v834 = vsel %vm578, 1, 0
        %v835 = vsel %vm579, 1, 0
        %v836 = vsel %vm580, 1, 0
        %v837 = vsel %vm581, 1, 0
        %v838 = vsel %vm582, 1, 0
        %v839 = vsel %vm583, 1, 0
        %v840 = vsel %vm584, 1, 0
        %v841 = vsel %vm585, 1, 0
        %v842 = vsel %vm586, 1, 0
        %v843 = vsel %vm587, 1, 0
        %v844 = vsel %vm588, 1, 0
        %v845 = vsel %vm589, 1, 0
        %v846 = vsel %vm590, 1, 0
        %v847 = vsel %vm591, 1, 0
        %v848 = vsel %vm592, 1, 0
        %v849 = vsel %vm593, 1, 0
        %v850 = vsel %vm594, 1, 0
        %v851 = vsel %vm595, 1, 0
        %v852 = vsel %vm596, 1, 0
        %v853 = vsel %vm597, 1, 0
        %v854 = vsel %vm598, 1, 0
        %v855 = vsel %vm599, 1, 0
        %v856 = vsel %vm600, 1, 0
        %v857 = vsel %vm601, 1, 0
        %v858 = vsel %vm602, 1, 0
        %v859 = vsel %vm603, 1, 0
        %v860 = vsel %vm604, 1, 0
        %v861 = vsel %vm605, 1, 0
        %v862 = vsel %vm606, 1, 0
        %v863 = vsel %vm607, 1, 0
        %v864 = vsel %vm608, 1, 0
        %v865 = vsel %vm609, 1, 0
        %v866 = vsel %vm610, 1, 0
        %v867 = vsel %vm611, 1, 0
        %v868 = vsel %vm612, 1, 0
        %v869 = vsel %vm613, 1, 0
        %v870 = vsel %vm614, 1, 0
        %v871 = vsel %vm615, 1, 0
        %v872 = vsel %vm616, 1, 0
        %v873 = vsel %vm617, 1, 0
        %v874 = vsel %vm618, 1, 0
        %v875 = vsel %vm619, 1, 0
        %v876 = vsel %vm620, 1, 0
        %v877 = vsel %vm621, 1, 0
        %v878 = vsel %vm622, 1, 0
        %v879 = vsel %vm623, 1, 0
        %v880 = vsel %vm624, 1, 0
        %v881 = vsel %vm625, 1, 0
        %v882 = vsel %vm626, 1, 0
        %v883 = vsel %vm627, 1, 0
        %v884 = vsel %vm628, 1, 0
        %v885 = vsel %vm629, 1, 0
        %v886 = vsel %vm630, 1, 0
        %v887 = vsel %vm631, 1, 0
        %v888 = vsel %vm632, 1, 0
        %v889 = vsel %vm633, 1, 0
        %v890 = vsel %vm634, 1, 0
        %v891 = vsel %vm635, 1, 0
        %v892 = vsel %vm636, 1, 0
        %v893 = vsel %vm637, 1, 0
        %v894 = vsel %vm638, 1, 0
        %v895 = vsel %vm639, 1, 0
        %v896 = vsel %vm640, 1, 0
        %v897 = vsel %vm641, 1, 0
        %v898 = vsel %vm642, 1, 0
        %v899 = vsel %vm643, 1, 0
        %v900 = vsel %vm644, 1, 0
        %v901 = vsel %vm645, 1, 0
        %v902 = vsel %vm646, 1, 0
        %v903 = vsel %vm647, 1, 0
        %v904 = vsel %vm648, 1, 0
        %v905 = vsel %vm649, 1, 0
        %v906 = vsel %vm650, 1, 0
        %v907 = vsel %vm651, 1, 0
        %v908 = vsel %vm652, 1, 0
        %v909 = vsel %vm653, 1, 0
        %v910 = vsel %vm654, 1, 0
        %v911 = vsel %vm655, 1, 0
        %v912 = vsel %vm656, 1, 0
        %v913 = vcvt.s32.f32 %v657
        %v914 = vcvt.s32.f32 %v658
        %v915 = vcvt.s32.f32 %v659
        %v916 = vcvt.s32.f32 %v660
        %v917 = vcvt.s32.f32 %v661
        %v918 = vcvt.s32.f32 %v662
        %v919 = vcvt.s32.f32 %v663
        %v920 = vcvt.s32.f32 %v664
        %v921 = vcvt.s32.f32 %v665
        %v922 = vcvt.s32.f32 %v666
        %v923 = vcvt.s32.f32 %v667
        %v924 = vcvt.s32.f32 %v668
        %v925 = vcvt.s32.f32 %v669
        %v926 = vcvt.s32.f32 %v670
        %v927 = vcvt.s32.f32 %v671
        %v928 = vcvt.s32.f32 %v672
        %v929 = vcvt.s32.f32 %v673
        %v930 = vcvt.s32.f32 %v674
        %v931 = vcvt.s32.f32 %v675
        %v932 = vcvt.s32.f32 %v676
        %v933 = vcvt.s32.f32 %v677
        %v934 = vcvt.s32.f32 %v678
        %v935 = vcvt.s32.f32 %v679
        %v936 = vcvt.s32.f32 %v680
        %v937 = vcvt.s32.f32 %v681
        %v938 = vcvt.s32.f32 %v682
        %v939 = vcvt.s32.f32 %v683
        %v940 = vcvt.s32.f32 %v684
        %v941 = vcvt.s32.f32 %v685
        %v942 = vcvt.s32.f32 %v686
        %v943 = vcvt.s32.f32 %v687
        %v944 = vcvt.s32.f32 %v688
        %v945 = vcvt.s32.f32 %v689
        %v946 = vcvt.s32.f32 %v690
        %v947 = vcvt.s32.f32 %v691
        %v948 = vcvt.s32.f32 %v692
        %v949 = vcvt.s32.f32 %v693
        %v950 = vcvt.s32.f32 %v694
        %v951 = vcvt.s32.f32 %v695
        %v952 = vcvt.s32.f32 %v696
        %v953 = vcvt.s32.f32 %v697
        %v954 = vcvt.s32.f32 %v698
        %v955 = vcvt.s32.f32 %v699
        %v956 = vcvt.s32.f32 %v700
        %v957 = vcvt.s32.f32 %v701
        %v958 = vcvt.s32.f32 %v702
        %v959 = vcvt.s32.f32 %v703
        %v960 = vcvt.s32.f32 %v704
        %v961 = vcvt.s32.f32 %v705
        %v962 = vcvt.s32.f32 %v706
        %v963 = vcvt.s32.f32 %v707
        %v964 = vcvt.s32.f32 %v708
        %v965 = vcvt.s32.f32 %v709
        %v966 = vcvt.s32.f32 %v710
        %v967 = vcvt.s32.f32 %v711
        %v968 = vcvt.s32.f32 %v712
        %v969 = vcvt.s32.f32 %v713
        %v970 = vcvt.s32.f32 %v714
        %v971 = vcvt.s32.f32 %v715
        %v972 = vcvt.s32.f32 %v716
        %v973 = vcvt.s32.f32 %v717
        %v974 = vcvt.s32.f32 %v718
        %v975 = vcvt.s32.f32 %v719
        %v976 = vcvt.s32.f32 %v720
        %v977 = vcvt.s32.f32 %v721
        %v978 = vcvt.s32.f32 %v722
        %v979 = vcvt.s32.f32 %v723
        %v980 = vcvt.s32.f32 %v724
        %v981 = vcvt.s32.f32 %v725
        %v982 = vcvt.s32.f32 %v726
        %v983 = vcvt.s32.f32 %v727
        %v984 = vcvt.s32.f32 %v728
        %v985 = vcvt.s32.f32 %v729
        %v986 = vcvt.s32.f32 %v730
        %v987 = vcvt.s32.f32 %v731
        %v988 = vcvt.s32.f32 %v732
        %v989 = vcvt.s32.f32 %v733
        %v990 = vcvt.s32.f32 %v734
        %v991 = vcvt.s32.f32 %v735
        %v992 = vcvt.s32.f32 %v736
        %v993 = vcvt.s32.f32 %v737
        %v994 = vcvt.s32.f32 %v738
        %v995 = vcvt.s32.f32 %v739
        %v996 = vcvt.s32.f32 %v740
        %v997 = vcvt.s32.f32 %v741
        %v998 = vcvt.s32.f32 %v742
        %v999 = vcvt.s32.f32 %v743
        %v1000 = vcvt.s32.f32 %v744
        %v1001 = vcvt.s32.f32 %v745
        %v1002 = vcvt.s32.f32 %v746
        %v1003 = vcvt.s32.f32 %v747
        %v1004 = vcvt.s32.f32 %v748
        %v1005 = vcvt.s32.f32 %v749
        %v1006 = vcvt.s32.f32 %v750
        %v1007 = vcvt.s32.f32 %v751
        %v1008 = vcvt.s32.f32 %v752
        %v1009 = vcvt.s32.f32 %v753
        %v1010 = vcvt.s32.f32 %v754
        %v1011 = vcvt.s32.f32 %v755
        %v1012 = vcvt.s32.f32 %v756
        %v1013 = vcvt.s32.f32 %v757
        %v1014 = vcvt.s32.f32 %v758
        %v1015 = vcvt.s32.f32 %v759
        %v1016 = vcvt.s32.f32 %v760
        %v1017 = vcvt.s32.f32 %v761
        %v1018 = vcvt.s32.f32 %v762
        %v1019 = vcvt.s32.f32 %v763
        %v1020 = vcvt.s32.f32 %v764
        %v1021 = vcvt.s32.f32 %v765
        %v1022 = vcvt.s32.f32 %v766
        %v1023 = vcvt.s32.f32 %v767
        %v1024 = vcvt.s32.f32 %v768
        %v1025 = vcvt.s32.f32 %v769
        %v1026 = vcvt.s32.f32 %v770
        %v1027 = vcvt.s32.f32 %v771
        %v1028 = vcvt.s32.f32 %v772
        %v1029 = vcvt.s32.f32 %v773
        %v1030 = vcvt.s32.f32 %v774
        %v1031 = vcvt.s32.f32 %v775
        %v1032 = vcvt.s32.f32 %v776
        %v1033 = vcvt.s32.f32 %v777
        %v1034 = vcvt.s32.f32 %v778
        %v1035 = vcvt.s32.f32 %v779
        %v1036 = vcvt.s32.f32 %v780
        %v1037 = vcvt.s32.f32 %v781
        %v1038 = vcvt.s32.f32 %v782
        %v1039 = vcvt.s32.f32 %v783
        %v1040 = vcvt.s32.f32 %v784
        %v1041 = vcvt.s32.f32 %v785
        %v1042 = vcvt.s32.f32 %v786
        %v1043 = vcvt.s32.f32 %v787
        %v1044 = vcvt.s32.f32 %v788
        %v1045 = vcvt.s32.f32 %v789
        %v1046 = vcvt.s32.f32 %v790
        %v1047 = vcvt.s32.f32 %v791
        %v1048 = vcvt.s32.f32 %v792
        %v1049 = vcvt.s32.f32 %v793
        %v1050 = vcvt.s32.f32 %v794
        %v1051 = vcvt.s32.f32 %v795
        %v1052 = vcvt.s32.f32 %v796
        %v1053 = vcvt.s32.f32 %v797
        %v1054 = vcvt.s32.f32 %v798
        %v1055 = vcvt.s32.f32 %v799
        %v1056 = vcvt.s32.f32 %v800
        %v1057 = vcvt.s32.f32 %v801
        %v1058 = vcvt.s32.f32 %v802
        %v1059 = vcvt.s32.f32 %v803
        %v1060 = vcvt.s32.f32 %v804
        %v1061 = vcvt.s32.f32 %v805
        %v1062 = vcvt.s32.f32 %v806
        %v1063 = vcvt.s32.f32 %v807
        %v1064 = vcvt.s32.f32 %v808
        %v1065 = vcvt.s32.f32 %v809
        %v1066 = vcvt.s32.f32 %v810
        %v1067 = vcvt.s32.f32 %v811
        %v1068 = vcvt.s32.f32 %v812
        %v1069 = vcvt.s32.f32 %v813
        %v1070 = vcvt.s32.f32 %v814
        %v1071 = vcvt.s32.f32 %v815
        %v1072 = vcvt.s32.f32 %v816
        %v1073 = vcvt.s32.f32 %v817
        %v1074 = vcvt.s32.f32 %v818
        %v1075 = vcvt.s32.f32 %v819
        %v1076 = vcvt.s32.f32 %v820
        %v1077 = vcvt.s32.f32 %v821
        %v1078 = vcvt.s32.f32 %v822
        %v1079 = vcvt.s32.f32 %v823
        %v1080 = vcvt.s32.f32 %v824
        %v1081 = vcvt.s32.f32 %v825
        %v1082 = vcvt.s32.f32 %v826
        %v1083 = vcvt.s32.f32 %v827
        %v1084 = vcvt.s32.f32 %v828
        %v1085 = vcvt.s32.f32 %v829
        %v1086 = vcvt.s32.f32 %v830
        %v1087 = vcvt.s32.f32 %v831
        %v1088 = vcvt.s32.f32 %v832
        %v1089 = vcvt.s32.f32 %v833
        %v1090 = vcvt.s32.f32 %v834
        %v1091 = vcvt.s32.f32 %v835
        %v1092 = vcvt.s32.f32 %v836
        %v1093 = vcvt.s32.f32 %v837
        %v1094 = vcvt.s32.f32 %v838
        %v1095 = vcvt.s32.f32 %v839
        %v1096 = vcvt.s32.f32 %v840
        %v1097 = vcvt.s32.f32 %v841
        %v1098 = vcvt.s32.f32 %v842
        %v1099 = vcvt.s32.f32 %v843
        %v1100 = vcvt.s32.f32 %v844
        %v1101 = vcvt.s32.f32 %v845
        %v1102 = vcvt.s32.f32 %v846
        %v1103 = vcvt.s32.f32 %v847
        %v1104 = vcvt.s32.f32 %v848
        %v1105 = vcvt.s32.f32 %v849
        %v1106 = vcvt.s32.f32 %v850
        %v1107 = vcvt.s32.f32 %v851
        %v1108 = vcvt.s32.f32 %v852
        %v1109 = vcvt.s32.f32 %v853
        %v1110 = vcvt.s32.f32 %v854
        %v1111 = vcvt.s32.f32 %v855
        %v1112 = vcvt.s32.f32 %v856
        %v1113 = vcvt.s32.f32 %v857
        %v1114 = vcvt.s32.f32 %v858
        %v1115 = vcvt.s32.f32 %v859
        %v1116 = vcvt.s32.f32 %v860
        %v1117 = vcvt.s32.f32 %v861
        %v1118 = vcvt.s32.f32 %v862
        %v1119 = vcvt.s32.f32 %v863
        %v1120 = vcvt.s32.f32 %v864
        %v1121 = vcvt.s32.f32 %v865
        %v1122 = vcvt.s32.f32 %v866
        %v1123 = vcvt.s32.f32 %v867
        %v1124 = vcvt.s32.f32 %v868
        %v1125 = vcvt.s32.f32 %v869
        %v1126 = vcvt.s32.f32 %v870
        %v1127 = vcvt.s32.f32 %v871
        %v1128 = vcvt.s32.f32 %v872
        %v1129 = vcvt.s32.f32 %v873
        %v1130 = vcvt.s32.f32 %v874
        %v1131 = vcvt.s32.f32 %v875
        %v1132 = vcvt.s32.f32 %v876
        %v1133 = vcvt.s32.f32 %v877
        %v1134 = vcvt.s32.f32 %v878
        %v1135 = vcvt.s32.f32 %v879
        %v1136 = vcvt.s32.f32 %v880
        %v1137 = vcvt.s32.f32 %v881
        %v1138 = vcvt.s32.f32 %v882
        %v1139 = vcvt.s32.f32 %v883
        %v1140 = vcvt.s32.f32 %v884
        %v1141 = vcvt.s32.f32 %v885
        %v1142 = vcvt.s32.f32 %v886
        %v1143 = vcvt.s32.f32 %v887
        %v1144 = vcvt.s32.f32 %v888
        %v1145 = vcvt.s32.f32 %v889
        %v1146 = vcvt.s32.f32 %v890
        %v1147 = vcvt.s32.f32 %v891
        %v1148 = vcvt.s32.f32 %v892
        %v1149 = vcvt.s32.f32 %v893
        %v1150 = vcvt.s32.f32 %v894
        %v1151 = vcvt.s32.f32 %v895
        %v1152 = vcvt.s32.f32 %v896
        %v1153 = vcvt.s32.f32 %v897
        %v1154 = vcvt.s32.f32 %v898
        %v1155 = vcvt.s32.f32 %v899
        %v1156 = vcvt.s32.f32 %v900
        %v1157 = vcvt.s32.f32 %v901
        %v1158 = vcvt.s32.f32 %v902
        %v1159 = vcvt.s32.f32 %v903
        %v1160 = vcvt.s32.f32 %v904
        %v1161 = vcvt.s32.f32 %v905
        %v1162 = vcvt.s32.f32 %v906
        %v1163 = vcvt.s32.f32 %v907
        %v1164 = vcvt.s32.f32 %v908
        %v1165 = vcvt.s32.f32 %v909
        %v1166 = vcvt.s32.f32 %v910
        %v1167 = vcvt.s32.f32 %v911
        %v1168 = vcvt.s32.f32 %v912
        %v1169 = vld [vmem:[#allocation2] sm:$0xff]
        %v1170 = vld [vmem:[#allocation2 + $0x8] sm:$0xff]
        %v1171 = vld [vmem:[#allocation2 + $0x10] sm:$0xff]
        %v1172 = vld [vmem:[#allocation2 + $0x18] sm:$0xff]
        %v1173 = vld [vmem:[#allocation2 + $0x20] sm:$0xff]
        %v1174 = vld [vmem:[#allocation2 + $0x28] sm:$0xff]
        %v1175 = vld [vmem:[#allocation2 + $0x30] sm:$0xff]
        %v1176 = vld [vmem:[#allocation2 + $0x38] sm:$0xff]
        %v1177 = vld [vmem:[#allocation2 + $0x40] sm:$0xf]
        %v1178 = vld [vmem:[#allocation2 + $0x48] sm:$0xf]
        %v1179 = vld [vmem:[#allocation2 + $0x50] sm:$0xf]
        %v1180 = vld [vmem:[#allocation2 + $0x58] sm:$0xf]
        %1181 = vmatprep.subr.mxu0 %v914
        %1182 = vmatpush1.msra.mxu0 %v913
        %1183 = vmatprep.subr.mxu0 %v918
        %1184 = vmatpush1.msra.mxu0 %v917
        %1185 = vmatprep.subr.mxu0 %v922
        %1186 = vmatpush1.msra.mxu0 %v921
        %1187 = vmatprep.subr.mxu0 %v926
        %1188 = vmatpush1.msra.mxu0 %v925
        %1189 = vmatprep.subr.mxu0 %v930
        %1190 = vmatpush1.msra.mxu0 %v929
        %1191 = vmatprep.subr.mxu0 %v934
        %1192 = vmatpush1.msra.mxu0 %v933
        %1193 = vmatprep.subr.mxu0 %v938
        %1194 = vmatpush1.msra.mxu0 %v937
        %1195 = vmatprep.subr.mxu0 %v942
        %1196 = vmatpush1.msra.mxu0 %v941
        %1197 = vmatprep.subr.mxu0 %v946
        %1198 = vmatpush1.msra.mxu0 %v945
        %1199 = vmatprep.subr.mxu0 %v950
        %1200 = vmatpush1.msra.mxu0 %v949
        %1201 = vmatprep.subr.mxu0 %v954
        %1202 = vmatpush1.msra.mxu0 %v953
        %1203 = vmatprep.subr.mxu0 %v958
        %1204 = vmatpush1.msra.mxu0 %v957
        %1205 = vmatprep.subr.mxu0 %v962
        %1206 = vmatpush1.msra.mxu0 %v961
        %1207 = vmatprep.subr.mxu0 %v966
        %1208 = vmatpush1.msra.mxu0 %v965
        %1209 = vmatprep.subr.mxu0 %v970
        %1210 = vmatpush1.msra.mxu0 %v969
        %1211 = vmatprep.subr.mxu0 %v974
        %1212 = vmatpush1.msra.mxu0 %v973
        %1213 = vmatprep.subr.mxu0 %v978
        %1214 = vmatpush1.msra.mxu0 %v977
        %1215 = vmatprep.subr.mxu0 %v982
        %1216 = vmatpush1.msra.mxu0 %v981
        %1217 = vmatprep.subr.mxu0 %v986
        %1218 = vmatpush1.msra.mxu0 %v985
        %1219 = vmatprep.subr.mxu0 %v990
        %1220 = vmatpush1.msra.mxu0 %v989
        %1221 = vmatprep.subr.mxu0 %v994
        %1222 = vmatpush1.msra.mxu0 %v993
        %1223 = vmatprep.subr.mxu0 %v998
        %1224 = vmatpush1.msra.mxu0 %v997
        %1225 = vmatprep.subr.mxu0 %v1002
        %1226 = vmatpush1.msra.mxu0 %v1001
        %1227 = vmatprep.subr.mxu0 %v1006
        %1228 = vmatpush1.msra.mxu0 %v1005
        %1229 = vmatprep.subr.mxu0 %v1010
        %1230 = vmatpush1.msra.mxu0 %v1009
        %1231 = vmatprep.subr.mxu0 %v1014
        %1232 = vmatpush1.msra.mxu0 %v1013
        %1233 = vmatprep.subr.mxu0 %v1018
        %1234 = vmatpush1.msra.mxu0 %v1017
        %1235 = vmatprep.subr.mxu0 %v1022
        %1236 = vmatpush1.msra.mxu0 %v1021
        %1237 = vmatprep.subr.mxu0 %v1026
        %1238 = vmatpush1.msra.mxu0 %v1025
        %1239 = vmatprep.subr.mxu0 %v1030
        %1240 = vmatpush1.msra.mxu0 %v1029
        %1241 = vmatprep.subr.mxu0 %v1034
        %1242 = vmatpush1.msra.mxu0 %v1033
        %1243 = vmatprep.subr.mxu0 %v1038
        %1244 = vmatpush1.msra.mxu0 %v1037
        %1245 = vmatprep.mubr.f32.mxu0 %v1170
        %1246 = vmatmul.mubr.f32.gmra.mrb[0].mxu0 %v1169
        %v1247 = vpop.f32.mrb[0].mxu0
        %v1248 = vadd.f32 0.0, %v1247
        %v1249 = vpop.f32.mrb[0].mxu0
        %v1250 = vadd.f32 0.0, %v1249
        %1251 = vmatprep.mubr.f32.mxu0 %v1174
        %1252 = vmatmul.mubr.f32.gmra.mrb[0].mxu0 %v1173
        %v1253 = vpop.f32.mrb[0].mxu0
        %v1254 = vadd.f32 0.0, %v1253
        %v1255 = vpop.f32.mrb[0].mxu0
        %v1256 = vadd.f32 0.0, %v1255
        %1257 = vmatprep.mubr.f32.mxu0 %v1178
        %1258 = vmatmul.mubr.f32.gmra.mrb[0].mxu0 %v1177
        %v1259 = vpop.f32.mrb[0].mxu0
        %v1260 = vadd.f32 0.0, %v1259
        %v1261 = vpop.f32.mrb[0].mxu0
        %v1262 = vadd.f32 0.0, %v1261
        %1263 = vdwg.mxu0
        %1264 = vmatprep.subr.mxu0 %v1042
        %1265 = vmatpush1.msra.mxu0 %v1041
        %1266 = vmatprep.subr.mxu0 %v1046
        %1267 = vmatpush1.msra.mxu0 %v1045
        %1268 = vmatprep.subr.mxu0 %v1050
        %1269 = vmatpush1.msra.mxu0 %v1049
        %1270 = vmatprep.subr.mxu0 %v1054
        %1271 = vmatpush1.msra.mxu0 %v1053
        %1272 = vmatprep.subr.mxu0 %v1058
        %1273 = vmatpush1.msra.mxu0 %v1057
        %1274 = vmatprep.subr.mxu0 %v1062
        %1275 = vmatpush1.msra.mxu0 %v1061
        %1276 = vmatprep.subr.mxu0 %v1066
        %1277 = vmatpush1.msra.mxu0 %v1065
        %1278 = vmatprep.subr.mxu0 %v1070
        %1279 = vmatpush1.msra.mxu0 %v1069
        %1280 = vmatprep.subr.mxu0 %v1074
        %1281 = vmatpush1.msra.mxu0 %v1073
        %1282 = vmatprep.subr.mxu0 %v1078
        %1283 = vmatpush1.msra.mxu0 %v1077
        %1284 = vmatprep.subr.mxu0 %v1082
        %1285 = vmatpush1.msra.mxu0 %v1081
        %1286 = vmatprep.subr.mxu0 %v1086
        %1287 = vmatpush1.msra.mxu0 %v1085
        %1288 = vmatprep.subr.mxu0 %v1090
        %1289 = vmatpush1.msra.mxu0 %v1089
        %1290 = vmatprep.subr.mxu0 %v1094
        %1291 = vmatpush1.msra.mxu0 %v1093
        %1292 = vmatprep.subr.mxu0 %v1098
        %1293 = vmatpush1.msra.mxu0 %v1097
        %1294 = vmatprep.subr.mxu0 %v1102
        %1295 = vmatpush1.msra.mxu0 %v1101
        %1296 = vmatprep.subr.mxu0 %v1106
        %1297 = vmatpush1.msra.mxu0 %v1105
        %1298 = vmatprep.subr.mxu0 %v1110
        %1299 = vmatpush1.msra.mxu0 %v1109
        %1300 = vmatprep.subr.mxu0 %v1114
        %1301 = vmatpush1.msra.mxu0 %v1113
        %1302 = vmatprep.subr.mxu0 %v1118
        %1303 = vmatpush1.msra.mxu0 %v1117
        %1304 = vmatprep.subr.mxu0 %v1122
        %1305 = vmatpush1.msra.mxu0 %v1121
        %1306 = vmatprep.subr.mxu0 %v1126
        %1307 = vmatpush1.msra.mxu0 %v1125
        %1308 = vmatprep.subr.mxu0 %v1130
        %1309 = vmatpush1.msra.mxu0 %v1129
        %1310 = vmatprep.subr.mxu0 %v1134
        %1311 = vmatpush1.msra.mxu0 %v1133
        %1312 = vmatprep.subr.mxu0 %v1138
        %1313 = vmatpush1.msra.mxu0 %v1137
        %1314 = vmatprep.subr.mxu0 %v1142
        %1315 = vmatpush1.msra.mxu0 %v1141
        %1316 = vmatprep.subr.mxu0 %v1146
        %1317 = vmatpush1.msra.mxu0 %v1145
        %1318 = vmatprep.subr.mxu0 %v1150
        %1319 = vmatpush1.msra.mxu0 %v1149
        %1320 = vmatprep.subr.mxu0 %v1154
        %1321 = vmatpush1.msra.mxu0 %v1153
        %1322 = vmatprep.subr.mxu0 %v1158
        %1323 = vmatpush1.msra.mxu0 %v1157
        %1324 = vmatprep.subr.mxu0 %v1162
        %1325 = vmatpush1.msra.mxu0 %v1161
        %1326 = vmatprep.subr.mxu0 %v1166
        %1327 = vmatpush1.msra.mxu0 %v1165
        %1328 = vmatprep.mubr.f32.mxu0 %v1172
        %1329 = vmatmul.mubr.f32.gmra.mrb[0].mxu0 %v1171
        %v1330 = vpop.f32.mrb[0].mxu0
        %v1331 = vadd.f32 %v1248, %v1330
        %v1332 = vpop.f32.mrb[0].mxu0
        %v1333 = vadd.f32 %v1250, %v1332
        %1334 = vmatprep.mubr.f32.mxu0 %v1176
        %1335 = vmatmul.mubr.f32.gmra.mrb[0].mxu0 %v1175
        %v1336 = vpop.f32.mrb[0].mxu0
        %v1337 = vadd.f32 %v1254, %v1336
        %v1338 = vpop.f32.mrb[0].mxu0
        %v1339 = vadd.f32 %v1256, %v1338
        %1340 = vmatprep.mubr.f32.mxu0 %v1180
        %1341 = vmatmul.mubr.f32.gmra.mrb[0].mxu0 %v1179
        %v1342 = vpop.f32.mrb[0].mxu0
        %v1343 = vadd.f32 %v1260, %v1342
        %v1344 = vpop.f32.mrb[0].mxu0
        %v1345 = vadd.f32 %v1262, %v1344
        %1346 = vdwg.mxu0
        %1347 = vmatprep.subr.mxu0 %v916
        %1348 = vmatpush1.msra.mxu0 %v915
        %1349 = vmatprep.subr.mxu0 %v920
        %1350 = vmatpush1.msra.mxu0 %v919
        %1351 = vmatprep.subr.mxu0 %v924
        %1352 = vmatpush1.msra.mxu0 %v923
        %1353 = vmatprep.subr.mxu0 %v928
        %1354 = vmatpush1.msra.mxu0 %v927
        %1355 = vmatprep.subr.mxu0 %v932
        %1356 = vmatpush1.msra.mxu0 %v931
        %1357 = vmatprep.subr.mxu0 %v936
        %1358 = vmatpush1.msra.mxu0 %v935
        %1359 = vmatprep.subr.mxu0 %v940
        %1360 = vmatpush1.msra.mxu0 %v939
        %1361 = vmatprep.subr.mxu0 %v944
        %1362 = vmatpush1.msra.mxu0 %v943
        %1363 = vmatprep.subr.mxu0 %v948
        %1364 = vmatpush1.msra.mxu0 %v947
        %1365 = vmatprep.subr.mxu0 %v952
        %1366 = vmatpush1.msra.mxu0 %v951
        %1367 = vmatprep.subr.mxu0 %v956
        %1368 = vmatpush1.msra.mxu0 %v955
        %1369 = vmatprep.subr.mxu0 %v960
        %1370 = vmatpush1.msra.mxu0 %v959
        %1371 = vmatprep.subr.mxu0 %v964
        %1372 = vmatpush1.msra.mxu0 %v963
        %1373 = vmatprep.subr.mxu0 %v968
        %1374 = vmatpush1.msra.mxu0 %v967
        %1375 = vmatprep.subr.mxu0 %v972
        %1376 = vmatpush1.msra.mxu0 %v971
        %1377 = vmatprep.subr.mxu0 %v976
        %1378 = vmatpush1.msra.mxu0 %v975
        %1379 = vmatprep.subr.mxu0 %v980
        %1380 = vmatpush1.msra.mxu0 %v979
        %1381 = vmatprep.subr.mxu0 %v984
        %1382 = vmatpush1.msra.mxu0 %v983
        %1383 = vmatprep.subr.mxu0 %v988
        %1384 = vmatpush1.msra.mxu0 %v987
        %1385 = vmatprep.subr.mxu0 %v992
        %1386 = vmatpush1.msra.mxu0 %v991
        %1387 = vmatprep.subr.mxu0 %v996
        %1388 = vmatpush1.msra.mxu0 %v995
        %1389 = vmatprep.subr.mxu0 %v1000
        %1390 = vmatpush1.msra.mxu0 %v999
        %1391 = vmatprep.subr.mxu0 %v1004
        %1392 = vmatpush1.msra.mxu0 %v1003
        %1393 = vmatprep.subr.mxu0 %v1008
        %1394 = vmatpush1.msra.mxu0 %v1007
        %1395 = vmatprep.subr.mxu0 %v1012
        %1396 = vmatpush1.msra.mxu0 %v1011
        %1397 = vmatprep.subr.mxu0 %v1016
        %1398 = vmatpush1.msra.mxu0 %v1015
        %1399 = vmatprep.subr.mxu0 %v1020
        %1400 = vmatpush1.msra.mxu0 %v1019
        %1401 = vmatprep.subr.mxu0 %v1024
        %1402 = vmatpush1.msra.mxu0 %v1023
        %1403 = vmatprep.subr.mxu0 %v1028
        %1404 = vmatpush1.msra.mxu0 %v1027
        %1405 = vmatprep.subr.mxu0 %v1032
        %1406 = vmatpush1.msra.mxu0 %v1031
        %1407 = vmatprep.subr.mxu0 %v1036
        %1408 = vmatpush1.msra.mxu0 %v1035
        %1409 = vmatprep.subr.mxu0 %v1040
        %1410 = vmatpush1.msra.mxu0 %v1039
        %1411 = vmatprep.mubr.f32.mxu0 %v1170
        %1412 = vmatmul.mubr.f32.gmra.mrb[0].mxu0 %v1169
        %v1413 = vpop.f32.mrb[0].mxu0
        %v1414 = vadd.f32 0.0, %v1413
        %v1415 = vpop.f32.mrb[0].mxu0
        %v1416 = vadd.f32 0.0, %v1415
        %1417 = vmatprep.mubr.f32.mxu0 %v1174
        %1418 = vmatmul.mubr.f32.gmra.mrb[0].mxu0 %v1173
        %v1419 = vpop.f32.mrb[0].mxu0
        %v1420 = vadd.f32 0.0, %v1419
        %v1421 = vpop.f32.mrb[0].mxu0
        %v1422 = vadd.f32 0.0, %v1421
        %1423 = vmatprep.mubr.f32.mxu0 %v1178
        %1424 = vmatmul.mubr.f32.gmra.mrb[0].mxu0 %v1177
        %v1425 = vpop.f32.mrb[0].mxu0
        %v1426 = vadd.f32 0.0, %v1425
        %v1427 = vpop.f32.mrb[0].mxu0
        %v1428 = vadd.f32 0.0, %v1427
        %1429 = vdwg.mxu0
        %1430 = vmatprep.subr.mxu0 %v1044
        %1431 = vmatpush1.msra.mxu0 %v1043
        %1432 = vmatprep.subr.mxu0 %v1048
        %1433 = vmatpush1.msra.mxu0 %v1047
        %1434 = vmatprep.subr.mxu0 %v1052
        %1435 = vmatpush1.msra.mxu0 %v1051
        %1436 = vmatprep.subr.mxu0 %v1056
        %1437 = vmatpush1.msra.mxu0 %v1055
        %1438 = vmatprep.subr.mxu0 %v1060
        %1439 = vmatpush1.msra.mxu0 %v1059
        %1440 = vmatprep.subr.mxu0 %v1064
        %1441 = vmatpush1.msra.mxu0 %v1063
        %1442 = vmatprep.subr.mxu0 %v1068
        %1443 = vmatpush1.msra.mxu0 %v1067
        %1444 = vmatprep.subr.mxu0 %v1072
        %1445 = vmatpush1.msra.mxu0 %v1071
        %1446 = vmatprep.subr.mxu0 %v1076
        %1447 = vmatpush1.msra.mxu0 %v1075
        %1448 = vmatprep.subr.mxu0 %v1080
        %1449 = vmatpush1.msra.mxu0 %v1079
        %1450 = vmatprep.subr.mxu0 %v1084
        %1451 = vmatpush1.msra.mxu0 %v1083
        %1452 = vmatprep.subr.mxu0 %v1088
        %1453 = vmatpush1.msra.mxu0 %v1087
        %1454 = vmatprep.subr.mxu0 %v1092
        %1455 = vmatpush1.msra.mxu0 %v1091
        %1456 = vmatprep.subr.mxu0 %v1096
        %1457 = vmatpush1.msra.mxu0 %v1095
        %1458 = vmatprep.subr.mxu0 %v1100
        %1459 = vmatpush1.msra.mxu0 %v1099
        %1460 = vmatprep.subr.mxu0 %v1104
        %1461 = vmatpush1.msra.mxu0 %v1103
        %1462 = vmatprep.subr.mxu0 %v1108
        %1463 = vmatpush1.msra.mxu0 %v1107
        %1464 = vmatprep.subr.mxu0 %v1112
        %1465 = vmatpush1.msra.mxu0 %v1111
        %1466 = vmatprep.subr.mxu0 %v1116
        %1467 = vmatpush1.msra.mxu0 %v1115
        %1468 = vmatprep.subr.mxu0 %v1120
        %1469 = vmatpush1.msra.mxu0 %v1119
        %1470 = vmatprep.subr.mxu0 %v1124
        %1471 = vmatpush1.msra.mxu0 %v1123
        %1472 = vmatprep.subr.mxu0 %v1128
        %1473 = vmatpush1.msra.mxu0 %v1127
        %1474 = vmatprep.subr.mxu0 %v1132
        %1475 = vmatpush1.msra.mxu0 %v1131
        %1476 = vmatprep.subr.mxu0 %v1136
        %1477 = vmatpush1.msra.mxu0 %v1135
        %1478 = vmatprep.subr.mxu0 %v1140
        %1479 = vmatpush1.msra.mxu0 %v1139
        %1480 = vmatprep.subr.mxu0 %v1144
        %1481 = vmatpush1.msra.mxu0 %v1143
        %1482 = vmatprep.subr.mxu0 %v1148
        %1483 = vmatpush1.msra.mxu0 %v1147
        %1484 = vmatprep.subr.mxu0 %v1152
        %1485 = vmatpush1.msra.mxu0 %v1151
        %1486 = vmatprep.subr.mxu0 %v1156
        %1487 = vmatpush1.msra.mxu0 %v1155
        %1488 = vmatprep.subr.mxu0 %v1160
        %1489 = vmatpush1.msra.mxu0 %v1159
        %1490 = vmatprep.subr.mxu0 %v1164
        %1491 = vmatpush1.msra.mxu0 %v1163
        %1492 = vmatprep.subr.mxu0 %v1168
        %1493 = vmatpush1.msra.mxu0 %v1167
        %1494 = vmatprep.mubr.f32.mxu0 %v1172
        %1495 = vmatmul.mubr.f32.gmra.mrb[0].mxu0 %v1171
        %v1496 = vpop.f32.mrb[0].mxu0
        %v1497 = vadd.f32 %v1414, %v1496
        %v1498 = vpop.f32.mrb[0].mxu0
        %v1499 = vadd.f32 %v1416, %v1498
        %1500 = vmatprep.mubr.f32.mxu0 %v1176
        %1501 = vmatmul.mubr.f32.gmra.mrb[0].mxu0 %v1175
        %v1502 = vpop.f32.mrb[0].mxu0
        %v1503 = vadd.f32 %v1420, %v1502
        %v1504 = vpop.f32.mrb[0].mxu0
        %v1505 = vadd.f32 %v1422, %v1504
        %1506 = vmatprep.mubr.f32.mxu0 %v1180
        %1507 = vmatmul.mubr.f32.gmra.mrb[0].mxu0 %v1179
        %v1508 = vpop.f32.mrb[0].mxu0
        %v1509 = vadd.f32 %v1426, %v1508
        %v1510 = vpop.f32.mrb[0].mxu0
        %v1511 = vadd.f32 %v1428, %v1510
        %1512 = vdwg.mxu0
        %v1513 = vld [vmem:[#allocation5] sm:$0xff]
        %v1514 = vld [vmem:[#allocation5 + $0x8] sm:$0xff]
        %v1515 = vld [vmem:[#allocation5 + $0x10] sm:$0xff]
        %v1516 = vld [vmem:[#allocation5 + $0x18] sm:$0xff]
        %v1517 = vld [vmem:[#allocation5 + $0x20] sm:$0xff]
        %v1518 = vld [vmem:[#allocation5 + $0x28] sm:$0xff]
        %v1519 = vld [vmem:[#allocation5 + $0x30] sm:$0xff]
        %v1520 = vld [vmem:[#allocation5 + $0x38] sm:$0xff]
        %v1521 = vld [vmem:[#allocation5 + $0x40] sm:$0xf]
        %v1522 = vld [vmem:[#allocation5 + $0x48] sm:$0xf]
        %v1523 = vld [vmem:[#allocation5 + $0x50] sm:$0xf]
        %v1524 = vld [vmem:[#allocation5 + $0x58] sm:$0xf]
        %1525 = vmatprep.subr.mxu0 %v914
        %1526 = vmatpush1.msra.mxu0 %v913
        %1527 = vmatprep.subr.mxu0 %v918
        %1528 = vmatpush1.msra.mxu0 %v917
        %1529 = vmatprep.subr.mxu0 %v922
        %1530 = vmatpush1.msra.mxu0 %v921
        %1531 = vmatprep.subr.mxu0 %v926
        %1532 = vmatpush1.msra.mxu0 %v925
        %1533 = vmatprep.subr.mxu0 %v930
        %1534 = vmatpush1.msra.mxu0 %v929
        %1535 = vmatprep.subr.mxu0 %v934
        %1536 = vmatpush1.msra.mxu0 %v933
        %1537 = vmatprep.subr.mxu0 %v938
        %1538 = vmatpush1.msra.mxu0 %v937
        %1539 = vmatprep.subr.mxu0 %v942
        %1540 = vmatpush1.msra.mxu0 %v941
        %1541 = vmatprep.subr.mxu0 %v946
        %1542 = vmatpush1.msra.mxu0 %v945
        %1543 = vmatprep.subr.mxu0 %v950
        %1544 = vmatpush1.msra.mxu0 %v949
        %1545 = vmatprep.subr.mxu0 %v954
        %1546 = vmatpush1.msra.mxu0 %v953
        %1547 = vmatprep.subr.mxu0 %v958
        %1548 = vmatpush1.msra.mxu0 %v957
        %1549 = vmatprep.subr.mxu0 %v962
        %1550 = vmatpush1.msra.mxu0 %v961
        %1551 = vmatprep.subr.mxu0 %v966
        %1552 = vmatpush1.msra.mxu0 %v965
        %1553 = vmatprep.subr.mxu0 %v970
        %1554 = vmatpush1.msra.mxu0 %v969
        %1555 = vmatprep.subr.mxu0 %v974
        %1556 = vmatpush1.msra.mxu0 %v973
        %1557 = vmatprep.subr.mxu0 %v978
        %1558 = vmatpush1.msra.mxu0 %v977
        %1559 = vmatprep.subr.mxu0 %v982
        %1560 = vmatpush1.msra.mxu0 %v981
        %1561 = vmatprep.subr.mxu0 %v986
        %1562 = vmatpush1.msra.mxu0 %v985
        %1563 = vmatprep.subr.mxu0 %v990
        %1564 = vmatpush1.msra.mxu0 %v989
        %1565 = vmatprep.subr.mxu0 %v994
        %1566 = vmatpush1.msra.mxu0 %v993
        %1567 = vmatprep.subr.mxu0 %v998
        %1568 = vmatpush1.msra.mxu0 %v997
        %1569 = vmatprep.subr.mxu0 %v1002
        %1570 = vmatpush1.msra.mxu0 %v1001
        %1571 = vmatprep.subr.mxu0 %v1006
        %1572 = vmatpush1.msra.mxu0 %v1005
        %1573 = vmatprep.subr.mxu0 %v1010
        %1574 = vmatpush1.msra.mxu0 %v1009
        %1575 = vmatprep.subr.mxu0 %v1014
        %1576 = vmatpush1.msra.mxu0 %v1013
        %1577 = vmatprep.subr.mxu0 %v1018
        %1578 = vmatpush1.msra.mxu0 %v1017
        %1579 = vmatprep.subr.mxu0 %v1022
        %1580 = vmatpush1.msra.mxu0 %v1021
        %1581 = vmatprep.subr.mxu0 %v1026
        %1582 = vmatpush1.msra.mxu0 %v1025
        %1583 = vmatprep.subr.mxu0 %v1030
        %1584 = vmatpush1.msra.mxu0 %v1029
        %1585 = vmatprep.subr.mxu0 %v1034
        %1586 = vmatpush1.msra.mxu0 %v1033
        %1587 = vmatprep.subr.mxu0 %v1038
        %1588 = vmatpush1.msra.mxu0 %v1037
        %1589 = vmatprep.mubr.f32.mxu0 %v1514
        %1590 = vmatmul.mubr.f32.gmra.mrb[0].mxu0 %v1513
        %v1591 = vpop.f32.mrb[0].mxu0
        %v1592 = vadd.f32 0.0, %v1591
        %v1593 = vpop.f32.mrb[0].mxu0
        %v1594 = vadd.f32 0.0, %v1593
        %1595 = vmatprep.mubr.f32.mxu0 %v1518
        %1596 = vmatmul.mubr.f32.gmra.mrb[0].mxu0 %v1517
        %v1597 = vpop.f32.mrb[0].mxu0
        %v1598 = vadd.f32 0.0, %v1597
        %v1599 = vpop.f32.mrb[0].mxu0
        %v1600 = vadd.f32 0.0, %v1599
        %1601 = vmatprep.mubr.f32.mxu0 %v1522
        %1602 = vmatmul.mubr.f32.gmra.mrb[0].mxu0 %v1521
        %v1603 = vpop.f32.mrb[0].mxu0
        %v1604 = vadd.f32 0.0, %v1603
        %v1605 = vpop.f32.mrb[0].mxu0
        %v1606 = vadd.f32 0.0, %v1605
        %1607 = vdwg.mxu0
        %1608 = vmatprep.subr.mxu0 %v1042
        %1609 = vmatpush1.msra.mxu0 %v1041
        %1610 = vmatprep.subr.mxu0 %v1046
        %1611 = vmatpush1.msra.mxu0 %v1045
        %1612 = vmatprep.subr.mxu0 %v1050
        %1613 = vmatpush1.msra.mxu0 %v1049
        %1614 = vmatprep.subr.mxu0 %v1054
        %1615 = vmatpush1.msra.mxu0 %v1053
        %1616 = vmatprep.subr.mxu0 %v1058
        %1617 = vmatpush1.msra.mxu0 %v1057
        %1618 = vmatprep.subr.mxu0 %v1062
        %1619 = vmatpush1.msra.mxu0 %v1061
        %1620 = vmatprep.subr.mxu0 %v1066
        %1621 = vmatpush1.msra.mxu0 %v1065
        %1622 = vmatprep.subr.mxu0 %v1070
        %1623 = vmatpush1.msra.mxu0 %v1069
        %1624 = vmatprep.subr.mxu0 %v1074
        %1625 = vmatpush1.msra.mxu0 %v1073
        %1626 = vmatprep.subr.mxu0 %v1078
        %1627 = vmatpush1.msra.mxu0 %v1077
        %1628 = vmatprep.subr.mxu0 %v1082
        %1629 = vmatpush1.msra.mxu0 %v1081
        %1630 = vmatprep.subr.mxu0 %v1086
        %1631 = vmatpush1.msra.mxu0 %v1085
        %1632 = vmatprep.subr.mxu0 %v1090
        %1633 = vmatpush1.msra.mxu0 %v1089
        %1634 = vmatprep.subr.mxu0 %v1094
        %1635 = vmatpush1.msra.mxu0 %v1093
        %1636 = vmatprep.subr.mxu0 %v1098
        %1637 = vmatpush1.msra.mxu0 %v1097
        %1638 = vmatprep.subr.mxu0 %v1102
        %1639 = vmatpush1.msra.mxu0 %v1101
        %1640 = vmatprep.subr.mxu0 %v1106
        %1641 = vmatpush1.msra.mxu0 %v1105
        %1642 = vmatprep.subr.mxu0 %v1110
        %1643 = vmatpush1.msra.mxu0 %v1109
        %1644 = vmatprep.subr.mxu0 %v1114
        %1645 = vmatpush1.msra.mxu0 %v1113
        %1646 = vmatprep.subr.mxu0 %v1118
        %1647 = vmatpush1.msra.mxu0 %v1117
        %1648 = vmatprep.subr.mxu0 %v1122
        %1649 = vmatpush1.msra.mxu0 %v1121
        %1650 = vmatprep.subr.mxu0 %v1126
        %1651 = vmatpush1.msra.mxu0 %v1125
        %1652 = vmatprep.subr.mxu0 %v1130
        %1653 = vmatpush1.msra.mxu0 %v1129
        %1654 = vmatprep.subr.mxu0 %v1134
        %1655 = vmatpush1.msra.mxu0 %v1133
        %1656 = vmatprep.subr.mxu0 %v1138
        %1657 = vmatpush1.msra.mxu0 %v1137
        %1658 = vmatprep.subr.mxu0 %v1142
        %1659 = vmatpush1.msra.mxu0 %v1141
        %1660 = vmatprep.subr.mxu0 %v1146
        %1661 = vmatpush1.msra.mxu0 %v1145
        %1662 = vmatprep.subr.mxu0 %v1150
        %1663 = vmatpush1.msra.mxu0 %v1149
        %1664 = vmatprep.subr.mxu0 %v1154
        %1665 = vmatpush1.msra.mxu0 %v1153
        %1666 = vmatprep.subr.mxu0 %v1158
        %1667 = vmatpush1.msra.mxu0 %v1157
        %1668 = vmatprep.subr.mxu0 %v1162
        %1669 = vmatpush1.msra.mxu0 %v1161
        %1670 = vmatprep.subr.mxu0 %v1166
        %1671 = vmatpush1.msra.mxu0 %v1165
        %1672 = vmatprep.mubr.f32.mxu0 %v1516
        %1673 = vmatmul.mubr.f32.gmra.mrb[0].mxu0 %v1515
        %v1674 = vpop.f32.mrb[0].mxu0
        %v1675 = vadd.f32 %v1592, %v1674
        %v1676 = vpop.f32.mrb[0].mxu0
        %v1677 = vadd.f32 %v1594, %v1676
        %1678 = vmatprep.mubr.f32.mxu0 %v1520
        %1679 = vmatmul.mubr.f32.gmra.mrb[0].mxu0 %v1519
        %v1680 = vpop.f32.mrb[0].mxu0
        %v1681 = vadd.f32 %v1598, %v1680
        %v1682 = vpop.f32.mrb[0].mxu0
        %v1683 = vadd.f32 %v1600, %v1682
        %1684 = vmatprep.mubr.f32.mxu0 %v1524
        %1685 = vmatmul.mubr.f32.gmra.mrb[0].mxu0 %v1523
        %v1686 = vpop.f32.mrb[0].mxu0
        %v1687 = vadd.f32 %v1604, %v1686
        %v1688 = vpop.f32.mrb[0].mxu0
        %v1689 = vadd.f32 %v1606, %v1688
        %1690 = vdwg.mxu0
        %1691 = vmatprep.subr.mxu0 %v916
        %1692 = vmatpush1.msra.mxu0 %v915
        %1693 = vmatprep.subr.mxu0 %v920
        %1694 = vmatpush1.msra.mxu0 %v919
        %1695 = vmatprep.subr.mxu0 %v924
        %1696 = vmatpush1.msra.mxu0 %v923
        %1697 = vmatprep.subr.mxu0 %v928
        %1698 = vmatpush1.msra.mxu0 %v927
        %1699 = vmatprep.subr.mxu0 %v932
        %1700 = vmatpush1.msra.mxu0 %v931
        %1701 = vmatprep.subr.mxu0 %v936
        %1702 = vmatpush1.msra.mxu0 %v935
        %1703 = vmatprep.subr.mxu0 %v940
        %1704 = vmatpush1.msra.mxu0 %v939
        %1705 = vmatprep.subr.mxu0 %v944
        %1706 = vmatpush1.msra.mxu0 %v943
        %1707 = vmatprep.subr.mxu0 %v948
        %1708 = vmatpush1.msra.mxu0 %v947
        %1709 = vmatprep.subr.mxu0 %v952
        %1710 = vmatpush1.msra.mxu0 %v951
        %1711 = vmatprep.subr.mxu0 %v956
        %1712 = vmatpush1.msra.mxu0 %v955
        %1713 = vmatprep.subr.mxu0 %v960
        %1714 = vmatpush1.msra.mxu0 %v959
        %1715 = vmatprep.subr.mxu0 %v964
        %1716 = vmatpush1.msra.mxu0 %v963
        %1717 = vmatprep.subr.mxu0 %v968
        %1718 = vmatpush1.msra.mxu0 %v967
        %1719 = vmatprep.subr.mxu0 %v972
        %1720 = vmatpush1.msra.mxu0 %v971
        %1721 = vmatprep.subr.mxu0 %v976
        %1722 = vmatpush1.msra.mxu0 %v975
        %1723 = vmatprep.subr.mxu0 %v980
        %1724 = vmatpush1.msra.mxu0 %v979
        %1725 = vmatprep.subr.mxu0 %v984
        %1726 = vmatpush1.msra.mxu0 %v983
        %1727 = vmatprep.subr.mxu0 %v988
        %1728 = vmatpush1.msra.mxu0 %v987
        %1729 = vmatprep.subr.mxu0 %v992
        %1730 = vmatpush1.msra.mxu0 %v991
        %1731 = vmatprep.subr.mxu0 %v996
        %1732 = vmatpush1.msra.mxu0 %v995
        %1733 = vmatprep.subr.mxu0 %v1000
        %1734 = vmatpush1.msra.mxu0 %v999
        %1735 = vmatprep.subr.mxu0 %v1004
        %1736 = vmatpush1.msra.mxu0 %v1003
        %1737 = vmatprep.subr.mxu0 %v1008
        %1738 = vmatpush1.msra.mxu0 %v1007
        %1739 = vmatprep.subr.mxu0 %v1012
        %1740 = vmatpush1.msra.mxu0 %v1011
        %1741 = vmatprep.subr.mxu0 %v1016
        %1742 = vmatpush1.msra.mxu0 %v1015
        %1743 = vmatprep.subr.mxu0 %v1020
        %1744 = vmatpush1.msra.mxu0 %v1019
        %1745 = vmatprep.subr.mxu0 %v1024
        %1746 = vmatpush1.msra.mxu0 %v1023
        %1747 = vmatprep.subr.mxu0 %v1028
        %1748 = vmatpush1.msra.mxu0 %v1027
        %1749 = vmatprep.subr.mxu0 %v1032
        %1750 = vmatpush1.msra.mxu0 %v1031
        %1751 = vmatprep.subr.mxu0 %v1036
        %1752 = vmatpush1.msra.mxu0 %v1035
        %1753 = vmatprep.subr.mxu0 %v1040
        %1754 = vmatpush1.msra.mxu0 %v1039
        %1755 = vmatprep.mubr.f32.mxu0 %v1514
        %1756 = vmatmul.mubr.f32.gmra.mrb[0].mxu0 %v1513
        %v1757 = vpop.f32.mrb[0].mxu0
        %v1758 = vadd.f32 0.0, %v1757
        %v1759 = vpop.f32.mrb[0].mxu0
        %v1760 = vadd.f32 0.0, %v1759
        %1761 = vmatprep.mubr.f32.mxu0 %v1518
        %1762 = vmatmul.mubr.f32.gmra.mrb[0].mxu0 %v1517
        %v1763 = vpop.f32.mrb[0].mxu0
        %v1764 = vadd.f32 0.0, %v1763
        %v1765 = vpop.f32.mrb[0].mxu0
        %v1766 = vadd.f32 0.0, %v1765
        %1767 = vmatprep.mubr.f32.mxu0 %v1522
        %1768 = vmatmul.mubr.f32.gmra.mrb[0].mxu0 %v1521
        %v1769 = vpop.f32.mrb[0].mxu0
        %v1770 = vadd.f32 0.0, %v1769
        %v1771 = vpop.f32.mrb[0].mxu0
        %v1772 = vadd.f32 0.0, %v1771
        %1773 = vdwg.mxu0
        %1774 = vmatprep.subr.mxu0 %v1044
        %1775 = vmatpush1.msra.mxu0 %v1043
        %1776 = vmatprep.subr.mxu0 %v1048
        %1777 = vmatpush1.msra.mxu0 %v1047
        %1778 = vmatprep.subr.mxu0 %v1052
        %1779 = vmatpush1.msra.mxu0 %v1051
        %1780 = vmatprep.subr.mxu0 %v1056
        %1781 = vmatpush1.msra.mxu0 %v1055
        %1782 = vmatprep.subr.mxu0 %v1060
        %1783 = vmatpush1.msra.mxu0 %v1059
        %1784 = vmatprep.subr.mxu0 %v1064
        %1785 = vmatpush1.msra.mxu0 %v1063
        %1786 = vmatprep.subr.mxu0 %v1068
        %1787 = vmatpush1.msra.mxu0 %v1067
        %1788 = vmatprep.subr.mxu0 %v1072
        %1789 = vmatpush1.msra.mxu0 %v1071
        %1790 = vmatprep.subr.mxu0 %v1076
        %1791 = vmatpush1.msra.mxu0 %v1075
        %1792 = vmatprep.subr.mxu0 %v1080
        %1793 = vmatpush1.msra.mxu0 %v1079
        %1794 = vmatprep.subr.mxu0 %v1084
        %1795 = vmatpush1.msra.mxu0 %v1083
        %1796 = vmatprep.subr.mxu0 %v1088
        %1797 = vmatpush1.msra.mxu0 %v1087
        %1798 = vmatprep.subr.mxu0 %v1092
        %1799 = vmatpush1.msra.mxu0 %v1091
        %1800 = vmatprep.subr.mxu0 %v1096
        %1801 = vmatpush1.msra.mxu0 %v1095
        %1802 = vmatprep.subr.mxu0 %v1100
        %1803 = vmatpush1.msra.mxu0 %v1099
        %1804 = vmatprep.subr.mxu0 %v1104
        %1805 = vmatpush1.msra.mxu0 %v1103
        %1806 = vmatprep.subr.mxu0 %v1108
        %1807 = vmatpush1.msra.mxu0 %v1107
        %1808 = vmatprep.subr.mxu0 %v1112
        %1809 = vmatpush1.msra.mxu0 %v1111
        %1810 = vmatprep.subr.mxu0 %v1116
        %1811 = vmatpush1.msra.mxu0 %v1115
        %1812 = vmatprep.subr.mxu0 %v1120
        %1813 = vmatpush1.msra.mxu0 %v1119
        %1814 = vmatprep.subr.mxu0 %v1124
        %1815 = vmatpush1.msra.mxu0 %v1123
        %1816 = vmatprep.subr.mxu0 %v1128
        %1817 = vmatpush1.msra.mxu0 %v1127
        %1818 = vmatprep.subr.mxu0 %v1132
        %1819 = vmatpush1.msra.mxu0 %v1131
        %1820 = vmatprep.subr.mxu0 %v1136
        %1821 = vmatpush1.msra.mxu0 %v1135
        %1822 = vmatprep.subr.mxu0 %v1140
        %1823 = vmatpush1.msra.mxu0 %v1139
        %1824 = vmatprep.subr.mxu0 %v1144
        %1825 = vmatpush1.msra.mxu0 %v1143
        %1826 = vmatprep.subr.mxu0 %v1148
        %1827 = vmatpush1.msra.mxu0 %v1147
        %1828 = vmatprep.subr.mxu0 %v1152
        %1829 = vmatpush1.msra.mxu0 %v1151
        %1830 = vmatprep.subr.mxu0 %v1156
        %1831 = vmatpush1.msra.mxu0 %v1155
        %1832 = vmatprep.subr.mxu0 %v1160
        %1833 = vmatpush1.msra.mxu0 %v1159
        %1834 = vmatprep.subr.mxu0 %v1164
        %1835 = vmatpush1.msra.mxu0 %v1163
        %1836 = vmatprep.subr.mxu0 %v1168
        %1837 = vmatpush1.msra.mxu0 %v1167
        %1838 = vmatprep.mubr.f32.mxu0 %v1516
        %1839 = vmatmul.mubr.f32.gmra.mrb[0].mxu0 %v1515
        %v1840 = vpop.f32.mrb[0].mxu0
        %v1841 = vadd.f32 %v1758, %v1840
        %v1842 = vpop.f32.mrb[0].mxu0
        %v1843 = vadd.f32 %v1760, %v1842
        %1844 = vmatprep.mubr.f32.mxu0 %v1520
        %1845 = vmatmul.mubr.f32.gmra.mrb[0].mxu0 %v1519
        %v1846 = vpop.f32.mrb[0].mxu0
        %v1847 = vadd.f32 %v1764, %v1846
        %v1848 = vpop.f32.mrb[0].mxu0
        %v1849 = vadd.f32 %v1766, %v1848
        %1850 = vmatprep.mubr.f32.mxu0 %v1524
        %1851 = vmatmul.mubr.f32.gmra.mrb[0].mxu0 %v1523
        %v1852 = vpop.f32.mrb[0].mxu0
        %v1853 = vadd.f32 %v1770, %v1852
        %v1854 = vpop.f32.mrb[0].mxu0
        %v1855 = vadd.f32 %v1772, %v1854
        %1856 = vdwg.mxu0
        %v1857 = vsub.f32 %v1675, %v1331
        %v1858 = vsub.f32 %v1677, %v1333
        %v1859 = vsub.f32 %v1841, %v1497
        %v1860 = vsub.f32 %v1843, %v1499
        %v1861 = vsub.f32 %v1681, %v1337
        %v1862 = vsub.f32 %v1683, %v1339
        %v1863 = vsub.f32 %v1847, %v1503
        %v1864 = vsub.f32 %v1849, %v1505
        %v1865 = vsub.f32 %v1687, %v1343
        %v1866 = vsub.f32 %v1689, %v1345
        %v1867 = vsub.f32 %v1853, %v1509
        %v1868 = vsub.f32 %v1855, %v1511
        %v1870 = vlaneseq
        %v1871 = vshrl.u32 %v1870, 7
        %v1872 = vsub.s32 0, %v1871
        %v1873 = vrot.slane %v317, %v1872
        %v1874 = vlaneseq
        %v1875 = vshrl.u32 %v1874, 7
        %v1876 = vsub.s32 1, %v1875
        %v1877 = vrot.slane %v317, %v1876
        %v1878 = vlaneseq
        %v1879 = vshrl.u32 %v1878, 7
        %v1880 = vsub.s32 2, %v1879
        %v1881 = vrot.slane %v317, %v1880
        %v1882 = vlaneseq
        %v1883 = vshrl.u32 %v1882, 7
        %v1884 = vsub.s32 3, %v1883
        %v1885 = vrot.slane %v317, %v1884
        %v1890 = vmul.f32 %v1873, %v1857
        %v1891 = vmul.f32 %v1877, %v1858
        %v1892 = vmul.f32 %v1881, %v1859
        %v1893 = vmul.f32 %v1885, %v1860
        %v1894 = vmul.f32 %v1873, %v1861
        %v1895 = vmul.f32 %v1877, %v1862
        %v1896 = vmul.f32 %v1881, %v1863
        %v1897 = vmul.f32 %v1885, %v1864
        %v1898 = vmul.f32 %v1873, %v1865
        %v1899 = vmul.f32 %v1877, %v1866
        %v1900 = vmul.f32 %v1881, %v1867
        %v1901 = vmul.f32 %v1885, %v1868
        %v1902 = vadd.f32 %v1331, %v1890
        %v1903 = vadd.f32 %v1333, %v1891
        %v1904 = vadd.f32 %v1497, %v1892
        %v1905 = vadd.f32 %v1499, %v1893
        %v1906 = vadd.f32 %v1337, %v1894
        %v1907 = vadd.f32 %v1339, %v1895
        %v1908 = vadd.f32 %v1503, %v1896
        %v1909 = vadd.f32 %v1505, %v1897
        %v1910 = vadd.f32 %v1343, %v1898
        %v1911 = vadd.f32 %v1345, %v1899
        %v1912 = vadd.f32 %v1509, %v1900
        %v1913 = vadd.f32 %v1511, %v1901
        %v1914 = vld [vmem:[%s313] sm:$0xff]
        %v1915 = vld [vmem:[%s313 + $0x8] sm:$0xff]
        %v1916 = vld [vmem:[%s313 + $0x10] sm:$0xf]
        %v1917 = vld [vmem:[%s2] sm:$0xff]
        %v1918 = vld [vmem:[%s2 + $0x8] sm:$0xff]
        %v1919 = vld [vmem:[%s2 + $0x10] sm:$0xff]
        %v1920 = vld [vmem:[%s2 + $0x18] sm:$0xff]
        %vm1921 = vcmask 64512
        %v1923 = vsel %vm1921, %v1914, 0
        %v1926 = vsel %vm1921, %v1915, 0
        %v1929 = vsel %vm1921, %v1916, 0
        %1931 = vmatprep.subr.mxu0 %v1918
        %1932 = vmatpush1.msra.mxu0 %v1917
        %1933 = vmatprep.subr.mxu0 0.0
        %1934 = vmatpush1.msra.mxu0 0.0
        %1935 = vmatprep.subr.mxu0 0.0
        %1936 = vmatpush1.msra.mxu0 0.0
        %1937 = vmatprep.subr.mxu0 0.0
        %1938 = vmatpush1.msra.mxu0 0.0
        %1939 = vmatprep.subr.mxu0 0.0
        %1940 = vmatpush1.msra.mxu0 0.0
        %1941 = vmatprep.subr.mxu0 0.0
        %1942 = vmatpush1.msra.mxu0 0.0
        %1943 = vmatprep.subr.mxu0 0.0
        %1944 = vmatpush1.msra.mxu0 0.0
        %1945 = vmatprep.subr.mxu0 0.0
        %1946 = vmatpush1.msra.mxu0 0.0
        %1947 = vmatprep.subr.mxu0 0.0
        %1948 = vmatpush1.msra.mxu0 0.0
        %1949 = vmatprep.subr.mxu0 0.0
        %1950 = vmatpush1.msra.mxu0 0.0
        %1951 = vmatprep.subr.mxu0 0.0
        %1952 = vmatpush1.msra.mxu0 0.0
        %1953 = vmatprep.subr.mxu0 0.0
        %1954 = vmatpush1.msra.mxu0 0.0
        %1955 = vmatprep.subr.mxu0 0.0
        %1956 = vmatpush1.msra.mxu0 0.0
        %1957 = vmatprep.subr.mxu0 0.0
        %1958 = vmatpush1.msra.mxu0 0.0
        %1959 = vmatprep.subr.mxu0 0.0
        %1960 = vmatpush1.msra.mxu0 0.0
        %1961 = vmatprep.subr.mxu0 0.0
        %1962 = vmatpush1.msra.mxu0 0.0
        %1963 = vmatprep.subr.mxu0 0.0
        %1964 = vmatpush1.msra.mxu0 0.0
        %1965 = vmatprep.subr.mxu0 0.0
        %1966 = vmatpush1.msra.mxu0 0.0
        %1967 = vmatprep.subr.mxu0 0.0
        %1968 = vmatpush1.msra.mxu0 0.0
        %1969 = vmatprep.subr.mxu0 0.0
        %1970 = vmatpush1.msra.mxu0 0.0
        %1971 = vmatprep.subr.mxu0 0.0
        %1972 = vmatpush1.msra.mxu0 0.0
        %1973 = vmatprep.subr.mxu0 0.0
        %1974 = vmatpush1.msra.mxu0 0.0
        %1975 = vmatprep.subr.mxu0 0.0
        %1976 = vmatpush1.msra.mxu0 0.0
        %1977 = vmatprep.subr.mxu0 0.0
        %1978 = vmatpush1.msra.mxu0 0.0
        %1979 = vmatprep.subr.mxu0 0.0
        %1980 = vmatpush1.msra.mxu0 0.0
        %1981 = vmatprep.subr.mxu0 0.0
        %1982 = vmatpush1.msra.mxu0 0.0
        %1983 = vmatprep.subr.mxu0 0.0
        %1984 = vmatpush1.msra.mxu0 0.0
        %1985 = vmatprep.subr.mxu0 0.0
        %1986 = vmatpush1.msra.mxu0 0.0
        %1987 = vmatprep.subr.mxu0 0.0
        %1988 = vmatpush1.msra.mxu0 0.0
        %1989 = vmatprep.subr.mxu0 0.0
        %1990 = vmatpush1.msra.mxu0 0.0
        %1991 = vmatprep.subr.mxu0 0.0
        %1992 = vmatpush1.msra.mxu0 0.0
        %1993 = vmatprep.subr.mxu0 0.0
        %1994 = vmatpush1.msra.mxu0 0.0
        %1995 = vmatprep.mubr.f32.mxu0 0.0
        %1996 = vmatmul.mubr.f32.gmra.mrb[0].mxu0 %v1923
        %v1997 = vpop.f32.mrb[0].mxu0
        %v1998 = vadd.f32 0.0, %v1997
        %v1999 = vpop.f32.mrb[0].mxu0
        %v2000 = vadd.f32 0.0, %v1999
        %2001 = vmatprep.mubr.f32.mxu0 0.0
        %2002 = vmatmul.mubr.f32.gmra.mrb[0].mxu0 %v1926
        %v2003 = vpop.f32.mrb[0].mxu0
        %v2004 = vadd.f32 0.0, %v2003
        %v2005 = vpop.f32.mrb[0].mxu0
        %v2006 = vadd.f32 0.0, %v2005
        %2007 = vmatprep.mubr.f32.mxu0 0.0
        %2008 = vmatmul.mubr.f32.gmra.mrb[0].mxu0 %v1929
        %v2009 = vpop.f32.mrb[0].mxu0
        %v2010 = vadd.f32 0.0, %v2009
        %v2011 = vpop.f32.mrb[0].mxu0
        %v2012 = vadd.f32 0.0, %v2011
        %2013 = vdwg.mxu0
        %2014 = vmatprep.subr.mxu0 %v1920
        %2015 = vmatpush1.msra.mxu0 %v1919
        %2016 = vmatprep.subr.mxu0 0.0
        %2017 = vmatpush1.msra.mxu0 0.0
        %2018 = vmatprep.subr.mxu0 0.0
        %2019 = vmatpush1.msra.mxu0 0.0
        %2020 = vmatprep.subr.mxu0 0.0
        %2021 = vmatpush1.msra.mxu0 0.0
        %2022 = vmatprep.subr.mxu0 0.0
        %2023 = vmatpush1.msra.mxu0 0.0
        %2024 = vmatprep.subr.mxu0 0.0
        %2025 = vmatpush1.msra.mxu0 0.0
        %2026 = vmatprep.subr.mxu0 0.0
        %2027 = vmatpush1.msra.mxu0 0.0
        %2028 = vmatprep.subr.mxu0 0.0
        %2029 = vmatpush1.msra.mxu0 0.0
        %2030 = vmatprep.subr.mxu0 0.0
        %2031 = vmatpush1.msra.mxu0 0.0
        %2032 = vmatprep.subr.mxu0 0.0
        %2033 = vmatpush1.msra.mxu0 0.0
        %2034 = vmatprep.subr.mxu0 0.0
        %2035 = vmatpush1.msra.mxu0 0.0
        %2036 = vmatprep.subr.mxu0 0.0
        %2037 = vmatpush1.msra.mxu0 0.0
        %2038 = vmatprep.subr.mxu0 0.0
        %2039 = vmatpush1.msra.mxu0 0.0
        %2040 = vmatprep.subr.mxu0 0.0
        %2041 = vmatpush1.msra.mxu0 0.0
        %2042 = vmatprep.subr.mxu0 0.0
        %2043 = vmatpush1.msra.mxu0 0.0
        %2044 = vmatprep.subr.mxu0 0.0
        %2045 = vmatpush1.msra.mxu0 0.0
        %2046 = vmatprep.subr.mxu0 0.0
        %2047 = vmatpush1.msra.mxu0 0.0
        %2048 = vmatprep.subr.mxu0 0.0
        %2049 = vmatpush1.msra.mxu0 0.0
        %2050 = vmatprep.subr.mxu0 0.0
        %2051 = vmatpush1.msra.mxu0 0.0
        %2052 = vmatprep.subr.mxu0 0.0
        %2053 = vmatpush1.msra.mxu0 0.0
        %2054 = vmatprep.subr.mxu0 0.0
        %2055 = vmatpush1.msra.mxu0 0.0
        %2056 = vmatprep.subr.mxu0 0.0
        %2057 = vmatpush1.msra.mxu0 0.0
        %2058 = vmatprep.subr.mxu0 0.0
        %2059 = vmatpush1.msra.mxu0 0.0
        %2060 = vmatprep.subr.mxu0 0.0
        %2061 = vmatpush1.msra.mxu0 0.0
        %2062 = vmatprep.subr.mxu0 0.0
        %2063 = vmatpush1.msra.mxu0 0.0
        %2064 = vmatprep.subr.mxu0 0.0
        %2065 = vmatpush1.msra.mxu0 0.0
        %2066 = vmatprep.subr.mxu0 0.0
        %2067 = vmatpush1.msra.mxu0 0.0
        %2068 = vmatprep.subr.mxu0 0.0
        %2069 = vmatpush1.msra.mxu0 0.0
        %2070 = vmatprep.subr.mxu0 0.0
        %2071 = vmatpush1.msra.mxu0 0.0
        %2072 = vmatprep.subr.mxu0 0.0
        %2073 = vmatpush1.msra.mxu0 0.0
        %2074 = vmatprep.subr.mxu0 0.0
        %2075 = vmatpush1.msra.mxu0 0.0
        %2076 = vmatprep.subr.mxu0 0.0
        %2077 = vmatpush1.msra.mxu0 0.0
        %2078 = vmatprep.mubr.f32.mxu0 0.0
        %2079 = vmatmul.mubr.f32.gmra.mrb[0].mxu0 %v1923
        %v2080 = vpop.f32.mrb[0].mxu0
        %v2081 = vadd.f32 0.0, %v2080
        %v2082 = vpop.f32.mrb[0].mxu0
        %v2083 = vadd.f32 0.0, %v2082
        %2084 = vmatprep.mubr.f32.mxu0 0.0
        %2085 = vmatmul.mubr.f32.gmra.mrb[0].mxu0 %v1926
        %v2086 = vpop.f32.mrb[0].mxu0
        %v2087 = vadd.f32 0.0, %v2086
        %v2088 = vpop.f32.mrb[0].mxu0
        %v2089 = vadd.f32 0.0, %v2088
        %2090 = vmatprep.mubr.f32.mxu0 0.0
        %2091 = vmatmul.mubr.f32.gmra.mrb[0].mxu0 %v1929
        %v2092 = vpop.f32.mrb[0].mxu0
        %v2093 = vadd.f32 0.0, %v2092
        %v2094 = vpop.f32.mrb[0].mxu0
        %v2095 = vadd.f32 0.0, %v2094
        %2096 = vdwg.mxu0
        %v2097 = vmul.f32 %v1902, %v1998
        %v2098 = vmul.f32 %v1903, %v2000
        %v2099 = vmul.f32 %v1904, %v2081
        %v2100 = vmul.f32 %v1905, %v2083
        %v2101 = vmul.f32 %v1906, %v2004
        %v2102 = vmul.f32 %v1907, %v2006
        %v2103 = vmul.f32 %v1908, %v2087
        %v2104 = vmul.f32 %v1909, %v2089
        %v2105 = vmul.f32 %v1910, %v2010
        %v2106 = vmul.f32 %v1911, %v2012
        %v2107 = vmul.f32 %v1912, %v2093
        %v2108 = vmul.f32 %v1913, %v2095
        %v2109 = vadd.f32 %v2097, %v2101
        %vm2110 = vcmask 1043456
        %v2111 = vsel %vm2110, %v2105, 0.0
        %v2112 = vadd.f32 %v2109, %v2111
        %v2113 = vrot.slane %v2112, 4
        %v2114 = vadd.f32 %v2112, %v2113
        %v2115 = vrot.slane %v2114, 2
        %v2116 = vadd.f32 %v2114, %v2115
        %v2117 = vrot.slane %v2116, 1
        %v2118 = vadd.f32 %v2116, %v2117
        %v2119 = vadd.f32 %v2098, %v2102
        %v2120 = vsel %vm2110, %v2106, 0.0
        %v2121 = vadd.f32 %v2119, %v2120
        %v2122 = vrot.slane %v2121, 4
        %v2123 = vadd.f32 %v2121, %v2122
        %v2124 = vrot.slane %v2123, 2
        %v2125 = vadd.f32 %v2123, %v2124
        %v2126 = vrot.slane %v2125, 1
        %v2127 = vadd.f32 %v2125, %v2126
        %v2128 = vadd.f32 %v2099, %v2103
        %v2129 = vsel %vm2110, %v2107, 0.0
        %v2130 = vadd.f32 %v2128, %v2129
        %v2131 = vrot.slane %v2130, 4
        %v2132 = vadd.f32 %v2130, %v2131
        %v2133 = vrot.slane %v2132, 2
        %v2134 = vadd.f32 %v2132, %v2133
        %v2135 = vrot.slane %v2134, 1
        %v2136 = vadd.f32 %v2134, %v2135
        %v2137 = vadd.f32 %v2100, %v2104
        %v2138 = vsel %vm2110, %v2108, 0.0
        %v2139 = vadd.f32 %v2137, %v2138
        %v2140 = vrot.slane %v2139, 4
        %v2141 = vadd.f32 %v2139, %v2140
        %v2142 = vrot.slane %v2141, 2
        %v2143 = vadd.f32 %v2141, %v2142
        %v2144 = vrot.slane %v2143, 1
        %v2145 = vadd.f32 %v2143, %v2144
        %v2150 = vcombine.low %v2118, %v2127
        %v2151 = vcombine.low %v2136, %v2145
        %v2153 = vunpack.c.l.s4 1966171168
        %v2154 = vunpack.c.0.s8 %v2153
        %v2155 = vlaneseq
        %v2156 = vshrl.u32 %v2155, 7
        %v2157 = vsub.s32 %v2154, %v2156
        %v2158 = vrot.slane %v2150, %v2157
        %v2160 = vunpack.c.l.s4 1966171168
        %v2161 = vunpack.c.0.s8 %v2160
        %v2162 = vlaneseq
        %v2163 = vshrl.u32 %v2162, 7
        %v2164 = vsub.s32 %v2161, %v2163
        %v2165 = vrot.slane %v2151, %v2164
        %v2166 = vcombine.low %v2158, %v2165
        %v2168 = vunpack.c.l.s4 1966171168
        %v2169 = vunpack.c.0.s8 %v2168
        %v2170 = vlaneseq
        %v2171 = vshrl.u32 %v2170, 7
        %v2172 = vsub.s32 %v2169, %v2171
        %v2173 = vrot.slane %v2166, %v2172
        %v2175 = vlaneseq
        %vm2176 = vcmp.ge.s32.totalorder %v2175, 0
        %vm2177 = vcmp.lt.s32.totalorder %v2175, 512
        %vm2178 = vmand %vm2176, %vm2177
        %2179 = vst.msk [vmem:[%s295] sm:$0xf] %vm2178, %v2173
        %s2180 = sand.u32 %s162, 1
        %s2181 = scalar_lea.sflag [#allocation4], %s2180
        %s2182 = sand.u32 %s162, 1
        %s2183 = smul.addr %s2182, 4
        %s2184 = scalar_lea.vmem [#allocation7], %s2183
        // Predicated region
        $region49: #{tpu_custom_call.1} parent=39 // pred_check
          %p2185 = pneg %p172
        $region50: #{tpu_custom_call.1} parent=39 // pred_check_branch
          %2187 = sbr.rel (%p2185) target = $region52
        $region51: #{tpu_custom_call.1} parent=39 // pred_region
          %s2188 = smul.u32 4, %s26
          %s2190 = ssub.s32 64, 64
          %2191 = vsyncadd %s2181, %s2190
          %s2192 = smul.addr %s25, 4
          %s2193 = sadd.s32 %s2188, %s2192
          %s2194 = smul.addr %s2193, 16
          %s2195 = scalar_lea.hbm %s5, %s2194
          %s2197 = sshll.u32 %s2184, 4
          %s2198 = int_to_ptr.vmem [resolvable:$true] %s2197
          %2200 = dma.vmem_to_hbm [thread:$0]  %s2198, 64, %s2195, %s2181
        $region52: #{tpu_custom_call.1} parent=39 // pred_fallthru
          _
      $region40: #{tpu_custom_call.1} parent=5 // pred_fallthru
        _
      %p2201 = scmp.le.s32.totalorder 2, %s16
      // Predicated region
      $region53: #{tpu_custom_call.1} parent=5 // pred_check
        %p2202 = pneg %p2201
      $region54: #{tpu_custom_call.1} parent=5 // pred_check_branch
        %2204 = sbr.rel (%p2202) target = $region56
      $region55: #{tpu_custom_call.1} parent=5 // pred_region
        %s2205 = ssub.s32 %s16, 2
        // Predicated region
        $region57: #{tpu_custom_call.1} parent=55 // pred_check
          %p2206 = pneg %p178
        $region58: #{tpu_custom_call.1} parent=55 // pred_check_branch
          %2208 = sbr.rel (%p2206) target = $region60
        $region59: #{tpu_custom_call.1} parent=55 // pred_region
          %s2209 = sand.u32 %s163, 1
          %s2210 = scalar_lea.sflag [#allocation4], %s2209
          %s2211 = sand.u32 %s163, 1
          %s2212 = smul.addr %s2211, 4
          %s2213 = scalar_lea.vmem [#allocation7], %s2212
          %2214 = dma.done %s2210, 64
        $region60: #{tpu_custom_call.1} parent=55 // pred_fallthru
          _
      $region56: #{tpu_custom_call.1} parent=5 // pred_fallthru
        _
    $region6: #{tpu_custom_call.1} parent=1 // loop_footer
      %s20 = sadd.s32 1, %s16
    $region7: #{tpu_custom_call.1} parent=1 // loop_footer_branch
      %15 = sbr.rel target = $region3
    $region8: #{tpu_custom_call.1} parent=1 // loop_exit
      _
    %2215 = vsyncpa [#allocation3], 1
    %s2216 = scalar_lea.sflag [#allocation3], 1
    %2217 = vsyncpa %s2216, 1
    %2218 = vsyncpa [#allocation6], 1
    %2219 = vsyncpa [#allocation4], 1
    %s2220 = scalar_lea.sflag [#allocation4], 1
    %2221 = vsyncpa %s2220, 1

</llo_original>
